<compile_context>
chip_gen: v5e
topology: v5e:2x2
jax: 0.10.0
libtpu: 0.0.40
codegen_flags: <defaults>
</compile_context>

<pallas_src>
import functools

import jax
import jax.numpy as jnp
from jax.experimental import pallas as pl
from jax.experimental.pallas import tpu as pltpu

EPS = 1e-5


# ----------------------------- Pallas kernels -------------------------------

def _fused_features_kernel(ev_ref, w1_ref, b1_ref, wm_ref, bm_ref, w3_ref,
                           b3_ref, m_ref, cw0_ref, cb0_ref, cw1_ref, cb1_ref,
                           out0_ref, out1_ref, *, hlayers, t0, t1):
    """One (filter, sample) step: eigf MLP -> gather/project -> conv -> sort -> sig2."""
    # ---- eigf MLP (BN already folded into weights), activations stay in vregs.
    ev = ev_ref[...]                                             # [n, 1]
    # first layer is K=1: outer-product style broadcast FMA on the VPU.
    h = jnp.maximum(ev * w1_ref[...] + b1_ref[...], 0.0)         # [n, hu]
    for l in range(hlayers):                                     # hu x hu -> MXU
        h = jnp.maximum(
            jnp.dot(h, wm_ref[l], preferred_element_type=jnp.float32)
            + bm_ref[l], 0.0)                                    # [n, hu]
    # last layer (hu -> 1) as VPU multiply + lane reduction (no N=1 MXU pass).
    h = jnp.maximum(
        jnp.sum(h * w3_ref[...], axis=1, keepdims=True) + b3_ref[...], 0.0)  # [n, 1]

    # ---- gathered & projected diagram entries for both diagram types at once.
    # m_ref rows = [dgm0 even | dgm0 odd | dgm1 even | dgm1 odd] projection rows.
    d = jnp.dot(m_ref[...], h, preferred_element_type=jnp.float32)  # [2*(T0+T1), 1]

    def conv_sort_sig(de, do, cw, cb, out_ref):
        # Conv1d(1, S, kernel=2, stride=2) over the diagram == two broadcast FMAs.
        c = de * cw[0:1, :] + do * cw[1:2, :] + cb               # [T, S]
        T = c.shape[0]
        rows = [c[t:t + 1, :] for t in range(T)]
        # Unrolled odd-even transposition sorting network (ascending, per column).
        for p in range(T):
            for j in range(p % 2, T - 1, 2):
                lo = jnp.minimum(rows[j], rows[j + 1])
                hi = jnp.maximum(rows[j], rows[j + 1])
                rows[j], rows[j + 1] = lo, hi
        path = jnp.concatenate(rows, axis=0)                     # [T, S] sorted
        delta = path[1:, :] - path[:-1, :]                       # [T-1, S]
        cum = path[:-1, :] - path[0:1, :]                        # [T-1, S]
        s1 = jnp.sum(delta, axis=0, keepdims=True)               # [1, S]
        # S2 = cum^T delta + 0.5 * delta^T delta  (Chen, level 2)
        s2 = jax.lax.dot_general(cum + 0.5 * delta, delta,
                                 (((0,), (0,)), ((), ())),
                                 preferred_element_type=jnp.float32)   # [S, S]
        out_ref[...] = jnp.concatenate([s1, s2], axis=0)         # [S+1, S]

    conv_sort_sig(d[0:t0, :], d[t0:2 * t0, :],
                  cw0_ref[...], cb0_ref[...], out0_ref)
    conv_sort_sig(d[2 * t0:2 * t0 + t1, :], d[2 * t0 + t1:2 * t0 + 2 * t1, :],
                  cw1_ref[...], cb1_ref[...], out1_ref)


def fused_features(ev3, mall, p, *, filters, hlayers, t0, t1, s0, s1):
    """Batched over (filters, L): eigf MLP + projection + conv + sort + level-2 sig."""
    L, n, _ = ev3.shape
    hu = p['W1'].shape[2]
    R = mall.shape[1]
    kernel = functools.partial(_fused_features_kernel,
                               hlayers=hlayers, t0=t0, t1=t1)
    return pl.pallas_call(
        kernel,
        out_shape=(jax.ShapeDtypeStruct((filters, L, s0 + 1, s0), jnp.float32),
                   jax.ShapeDtypeStruct((filters, L, s1 + 1, s1), jnp.float32)),
        grid=(filters, L),
        in_specs=[
            pl.BlockSpec((None, n, 1), lambda f, i: (i, 0, 0)),            # eigenvalues
            pl.BlockSpec((None, 1, hu), lambda f, i: (f, 0, 0)),           # W1 (folded)
            pl.BlockSpec((None, 1, hu), lambda f, i: (f, 0, 0)),           # b1
            pl.BlockSpec((None, hlayers, hu, hu), lambda f, i: (f, 0, 0, 0)),  # Wmid
            pl.BlockSpec((None, hlayers, 1, hu), lambda f, i: (f, 0, 0, 0)),   # bmid
            pl.BlockSpec((None, 1, hu), lambda f, i: (f, 0, 0)),           # W3 (row)
            pl.BlockSpec((None, 1, 1), lambda f, i: (f, 0, 0)),            # b3
            pl.BlockSpec((None, R, n), lambda f, i: (i, 0, 0)),            # gather/proj
            pl.BlockSpec((None, 2, s0), lambda f, i: (f, 0, 0)),           # conv0 W
            pl.BlockSpec((None, 1, s0), lambda f, i: (f, 0, 0)),           # conv0 b
            pl.BlockSpec((None, 2, s1), lambda f, i: (f, 0, 0)),           # conv1 W
            pl.BlockSpec((None, 1, s1), lambda f, i: (f, 0, 0)),           # conv1 b
        ],
        out_specs=(pl.BlockSpec((None, None, s0 + 1, s0), lambda f, i: (f, i, 0, 0)),
                   pl.BlockSpec((None, None, s1 + 1, s1), lambda f, i: (f, i, 0, 0))),
        compiler_params=pltpu.CompilerParams(
            dimension_semantics=("parallel", "parallel")),
    )(ev3, p['W1'], p['B1'], p['Wmid'], p['Bmid'], p['W3'], p['B3'],
      mall, p['CW0'], p['CB0'], p['CW1'], p['CB1'])


def _final_kernel(x_ref, w_ref, b_ref, o_ref):
    """Dropout(eval)=id; Linear(F*sigsum, 1)+BatchNorm1d(1) folded: VPU reduce."""
    y = jnp.sum(x_ref[...] * w_ref[...], axis=1, keepdims=True) + b_ref[...]
    o_ref[...] = y.astype(o_ref.dtype)


def final_dense(x, w_row, b):
    L, K = x.shape
    return pl.pallas_call(
        _final_kernel,
        out_shape=jax.ShapeDtypeStruct((L, 1), jnp.float32),
        grid=(1,),
        in_specs=[pl.BlockSpec((L, K), lambda i: (0, 0)),
                  pl.BlockSpec((1, K), lambda i: (0, 0)),
                  pl.BlockSpec((1, 1), lambda i: (0, 0))],
        out_specs=pl.BlockSpec((L, 1), lambda i: (0, 0)),
    )(x, w_row, b)


# --------------------------- parameters (synthetic) --------------------------

def init_linear(key, fan_in, fan_out):
    kw, kb = jax.random.split(key)
    lim = 1.0 / (fan_in ** 0.5)
    w = jax.random.uniform(kw, (fan_in, fan_out), jnp.float32, -lim, lim)
    b = jax.random.uniform(kb, (fan_out,), jnp.float32, -lim, lim)
    return w, b


def init_params(key, *, filters, hlayers, hu, slices, final_vec_length):
    """Per-filter weights stacked on a leading axis; eval-mode BatchNorm folded in."""
    assert hlayers >= 1
    # default BatchNorm1d in eval(): gamma=1, beta=0, mean=0, var=1 -> scale only.
    scale = (1.0 + EPS) ** -0.5
    S0, S1 = slices
    keys = jax.random.split(key, 4)
    kf = jax.random.split(keys[0], filters)
    kc0 = jax.random.split(keys[1], filters)
    kc1 = jax.random.split(keys[2], filters)

    W1, B1, Wm, Bm, W3, B3 = [], [], [], [], [], []
    CW0, CB0, CW1, CB1 = [], [], [], []
    for f in range(filters):
        kl = jax.random.split(kf[f], hlayers + 2)
        w, b = init_linear(kl[0], 1, hu)                     # linear_block(1, hu)
        W1.append((w * scale).reshape(1, 1, hu))
        B1.append((b * scale).reshape(1, 1, hu))
        wm_l, bm_l = [], []
        for l in range(hlayers):                             # linear_block(hu, hu)
            w, b = init_linear(kl[1 + l], hu, hu)
            wm_l.append(w * scale)
            bm_l.append((b * scale).reshape(1, hu))
        Wm.append(jnp.stack(wm_l)[None])
        Bm.append(jnp.stack(bm_l)[None])
        w, b = init_linear(kl[hlayers + 1], hu, 1)           # linear_block(hu, 1)
        W3.append((w * scale).reshape(1, 1, hu))             # stored as a row
        B3.append((b * scale).reshape(1, 1, 1))
        w, b = init_linear(kc0[f], 2, S0)                    # Conv1d(1, S0, 2, 2)
        CW0.append(w[None])
        CB0.append(b.reshape(1, 1, S0))
        w, b = init_linear(kc1[f], 2, S1)                    # Conv1d(1, S1, 2, 2)
        CW1.append(w[None])
        CB1.append(b.reshape(1, 1, S1))

    wf, bf = init_linear(keys[3], final_vec_length, 1)       # final Linear + BN(1)
    return {
        'W1': jnp.concatenate(W1), 'B1': jnp.concatenate(B1),
        'Wmid': jnp.concatenate(Wm), 'Bmid': jnp.concatenate(Bm),
        'W3': jnp.concatenate(W3), 'B3': jnp.concatenate(B3),
        'CW0': jnp.concatenate(CW0), 'CB0': jnp.concatenate(CB0),
        'CW1': jnp.concatenate(CW1), 'CB1': jnp.concatenate(CB1),
        'WF': (wf * scale).reshape(1, final_vec_length),
        'BF': (bf * scale).reshape(1, 1),
    }


# ------------------------------- forward pass --------------------------------

def dgmslice_forward(params, eigenvalues, eigenvectors_sq, mask0, mask1,
                     *, filters, hlayers, slices):
    L, n = eigenvalues.shape
    S0, S1 = slices
    T0, T1 = mask0.shape[1] // 2, mask1.shape[1] // 2
    ev3 = eigenvalues.astype(jnp.float32)[:, :, None]            # [L, n, 1]

    # Fold the persistence index masks with eigenvectors_sq into per-sample
    # gather-projection matrices so the kernel only sees dense matmuls:
    #   row r of Mall[i] = eigenvectors_sq[i][:, idx[i, r]]^T.
    # TODO(synk): EPH_fast2 (extended persistent homology via multiprocessing) has no
    # Pallas equivalent; deterministic synthetic index masks stand in for its output.
    VT = jnp.swapaxes(eigenvectors_sq, 1, 2)                     # [L, n, n]
    idx = jnp.concatenate([mask0[:, 0::2], mask0[:, 1::2],
                           mask1[:, 0::2], mask1[:, 1::2]], axis=1)
    mall = jnp.take_along_axis(VT, idx[:, :, None], axis=1)      # [L, 2*(T0+T1), n]

    out0, out1 = fused_features(ev3, mall, params, filters=filters,
                                hlayers=hlayers, t0=T0, t1=T1, s0=S0, s1=S1)

    sig0 = (S0 + 1) * S0                                         # = S0 + S0^2
    sig1 = (S1 + 1) * S1
    feat = jnp.concatenate([out0.reshape(filters, L, sig0),
                            out1.reshape(filters, L, sig1)], axis=-1)  # [F, L, sum]
    x = jnp.transpose(feat, (1, 0, 2)).reshape(L, filters * (sig0 + sig1))
    return final_dense(x, params['WF'], params['BF'])            # [L, 1]


# ------------------------------------ main ------------------------------------

if __name__ == "__main__":
    # dgmslice_ps2(ef_num_hlayers=1, ef_num_hu=32, ef_num_filters=2,
    #              pslevel=[2, 2], num_slices=[8, 8], dropout=0.5)
    filters, hlayers, hu = 2, 1, 32
    slices = (8, 8)
    pslevel = (2, 2)          # level-2 signatures (implemented exactly)
    L, n = 2, 16              # minibatch of 2 samples, 16 eigenvalues each
    P0 = P1 = 16              # synthetic diagram sizes (conv input lengths)

    siglength = [slices[k] + slices[k] ** 2 for k in range(2)]   # iisignature.siglength(d, 2)
    final_vec_length = filters * sum(siglength)

    key = jax.random.PRNGKey(0)
    kp, ke, ku, km = jax.random.split(key, 4)
    params = init_params(kp, filters=filters, hlayers=hlayers, hu=hu,
                         slices=slices, final_vec_length=final_vec_length)

    eigenvalues = jax.random.uniform(ke, (L, n), jnp.float32, 0.0, 2.0)
    evec = jax.random.normal(ku, (L, n, n), jnp.float32)
    eigenvectors_sq = evec * evec                                # nonnegative, like |v|^2
    # synthetic persistence masks (see TODO(synk) in dgmslice_forward)
    mask0 = jnp.stack([jax.random.permutation(jax.random.fold_in(km, i), n)[:P0]
                       for i in range(L)]).astype(jnp.int32)
    mask1 = jnp.stack([jax.random.permutation(jax.random.fold_in(km, 100 + i), n)[:P1]
                       for i in range(L)]).astype(jnp.int32)

    fwd = jax.jit(functools.partial(dgmslice_forward, filters=filters,
                                    hlayers=hlayers, slices=slices))
    out = fwd(params, eigenvalues, eigenvectors_sq, mask0, mask1)
    out = jax.block_until_ready(out)
    assert out.shape == (L, 1) and bool(jnp.all(jnp.isfinite(out)))
    print("KERNEL_OK")
</pallas_src>

<mosaic_0001>
module attributes {stable_mosaic.version = 11 : i64} {
  func.func @_fused_features_kernel(%arg0: i32, %arg1: i32, %arg2: memref<1x16x1xf32, #tpu.memory_space<vmem>>, %arg3: memref<1x1x32xf32, #tpu.memory_space<vmem>>, %arg4: memref<1x1x32xf32, #tpu.memory_space<vmem>>, %arg5: memref<1x1x32x32xf32, #tpu.memory_space<vmem>>, %arg6: memref<1x1x1x32xf32, #tpu.memory_space<vmem>>, %arg7: memref<1x1x32xf32, #tpu.memory_space<vmem>>, %arg8: memref<1x1x1xf32, #tpu.memory_space<vmem>>, %arg9: memref<1x32x16xf32, #tpu.memory_space<vmem>>, %arg10: memref<1x2x8xf32, #tpu.memory_space<vmem>>, %arg11: memref<1x1x8xf32, #tpu.memory_space<vmem>>, %arg12: memref<1x2x8xf32, #tpu.memory_space<vmem>>, %arg13: memref<1x1x8xf32, #tpu.memory_space<vmem>>, %arg14: memref<1x1x9x8xf32, #tpu.memory_space<vmem>>, %arg15: memref<1x1x9x8xf32, #tpu.memory_space<vmem>>) attributes {dimension_semantics = [#tpu.dimension_semantics<parallel>, #tpu.dimension_semantics<parallel>], iteration_bounds = array<i64: 2, 2>, scalar_prefetch = 0 : i64, scratch_operands = 0 : i64, tpu.core_type = #tpu.core_type<tc>, window_params = [{transform_indices = @transform_0, window_bounds = array<i64: 1, 16, 1>}, {transform_indices = @transform_1, window_bounds = array<i64: 1, 1, 32>}, {transform_indices = @transform_2, window_bounds = array<i64: 1, 1, 32>}, {transform_indices = @transform_3, window_bounds = array<i64: 1, 1, 32, 32>}, {transform_indices = @transform_4, window_bounds = array<i64: 1, 1, 1, 32>}, {transform_indices = @transform_5, window_bounds = array<i64: 1, 1, 32>}, {transform_indices = @transform_6, window_bounds = array<i64: 1, 1, 1>}, {transform_indices = @transform_7, window_bounds = array<i64: 1, 32, 16>}, {transform_indices = @transform_8, window_bounds = array<i64: 1, 2, 8>}, {transform_indices = @transform_9, window_bounds = array<i64: 1, 1, 8>}, {transform_indices = @transform_10, window_bounds = array<i64: 1, 2, 8>}, {transform_indices = @transform_11, window_bounds = array<i64: 1, 1, 8>}, {transform_indices = @transform_12, window_bounds = array<i64: 1, 1, 9, 8>}, {transform_indices = @transform_13, window_bounds = array<i64: 1, 1, 9, 8>}]} {
    %c0 = arith.constant 0 : index
    %c0_0 = arith.constant 0 : index
    %c0_1 = arith.constant 0 : index
    %0 = vector.load %arg2[%c0, %c0_0, %c0_1] : memref<1x16x1xf32, #tpu.memory_space<vmem>>, vector<1x16x1xf32>
    %1 = vector.shape_cast %0 : vector<1x16x1xf32> to vector<16x1xf32>
    %c0_2 = arith.constant 0 : index
    %c0_3 = arith.constant 0 : index
    %c0_4 = arith.constant 0 : index
    %2 = vector.load %arg3[%c0_2, %c0_3, %c0_4] : memref<1x1x32xf32, #tpu.memory_space<vmem>>, vector<1x1x32xf32>
    %3 = vector.shape_cast %2 : vector<1x1x32xf32> to vector<1x32xf32>
    %4 = vector.broadcast %1 : vector<16x1xf32> to vector<16x32xf32>
    %5 = vector.broadcast %3 : vector<1x32xf32> to vector<16x32xf32>
    %6 = arith.mulf %4, %5 : vector<16x32xf32>
    %c0_5 = arith.constant 0 : index
    %c0_6 = arith.constant 0 : index
    %c0_7 = arith.constant 0 : index
    %7 = vector.load %arg4[%c0_5, %c0_6, %c0_7] : memref<1x1x32xf32, #tpu.memory_space<vmem>>, vector<1x1x32xf32>
    %8 = vector.shape_cast %7 : vector<1x1x32xf32> to vector<1x32xf32>
    %9 = vector.broadcast %8 : vector<1x32xf32> to vector<16x32xf32>
    %10 = arith.addf %6, %9 : vector<16x32xf32>
    %cst = arith.constant 0.000000e+00 : f32
    %11 = vector.broadcast %cst : f32 to vector<16x32xf32>
    %12 = arith.maximumf %10, %11 : vector<16x32xf32>
    %c0_8 = arith.constant 0 : index
    %c0_9 = arith.constant 0 : index
    %c0_10 = arith.constant 0 : index
    %c0_11 = arith.constant 0 : index
    %13 = vector.load %arg5[%c0_8, %c0_9, %c0_10, %c0_11] : memref<1x1x32x32xf32, #tpu.memory_space<vmem>>, vector<1x1x32x32xf32>
    %14 = vector.shape_cast %13 : vector<1x1x32x32xf32> to vector<32x32xf32>
    %cst_12 = arith.constant dense<0.000000e+00> : vector<16x32xf32>
    %15 = tpu.matmul %12, %14, %cst_12 {dimension_numbers = #tpu.dot_dimension_numbers<[1], [0], [0], [1], [0, 0, 1, 1], [], []>} : vector<16x32xf32>, vector<32x32xf32>, vector<16x32xf32> -> vector<16x32xf32>
    %c0_13 = arith.constant 0 : index
    %c0_14 = arith.constant 0 : index
    %c0_15 = arith.constant 0 : index
    %c0_16 = arith.constant 0 : index
    %16 = vector.load %arg6[%c0_13, %c0_14, %c0_15, %c0_16] : memref<1x1x1x32xf32, #tpu.memory_space<vmem>>, vector<1x1x1x32xf32>
    %17 = vector.shape_cast %16 : vector<1x1x1x32xf32> to vector<1x32xf32>
    %18 = vector.broadcast %17 : vector<1x32xf32> to vector<16x32xf32>
    %19 = arith.addf %15, %18 : vector<16x32xf32>
    %cst_17 = arith.constant 0.000000e+00 : f32
    %20 = vector.broadcast %cst_17 : f32 to vector<16x32xf32>
    %21 = arith.maximumf %19, %20 : vector<16x32xf32>
    %c0_18 = arith.constant 0 : index
    %c0_19 = arith.constant 0 : index
    %c0_20 = arith.constant 0 : index
    %22 = vector.load %arg7[%c0_18, %c0_19, %c0_20] : memref<1x1x32xf32, #tpu.memory_space<vmem>>, vector<1x1x32xf32>
    %23 = vector.shape_cast %22 : vector<1x1x32xf32> to vector<1x32xf32>
    %24 = vector.broadcast %23 : vector<1x32xf32> to vector<16x32xf32>
    %25 = arith.mulf %21, %24 : vector<16x32xf32>
    %cst_21 = arith.constant dense<0.000000e+00> : vector<16xf32>
    %26 = vector.multi_reduction <add>, %25, %cst_21 [1] : vector<16x32xf32> to vector<16xf32>
    %27 = vector.shape_cast %26 : vector<16xf32> to vector<16x1xf32>
    %c0_22 = arith.constant 0 : index
    %c0_23 = arith.constant 0 : index
    %c0_24 = arith.constant 0 : index
    %28 = vector.load %arg8[%c0_22, %c0_23, %c0_24] : memref<1x1x1xf32, #tpu.memory_space<vmem>>, vector<1x1x1xf32>
    %29 = vector.shape_cast %28 : vector<1x1x1xf32> to vector<1x1xf32>
    %30 = vector.broadcast %29 : vector<1x1xf32> to vector<16x1xf32>
    %31 = arith.addf %27, %30 : vector<16x1xf32>
    %cst_25 = arith.constant 0.000000e+00 : f32
    %32 = vector.broadcast %cst_25 : f32 to vector<16x1xf32>
    %33 = arith.maximumf %31, %32 : vector<16x1xf32>
    %c0_26 = arith.constant 0 : index
    %c0_27 = arith.constant 0 : index
    %c0_28 = arith.constant 0 : index
    %34 = vector.load %arg9[%c0_26, %c0_27, %c0_28] : memref<1x32x16xf32, #tpu.memory_space<vmem>>, vector<1x32x16xf32>
    %35 = vector.shape_cast %34 : vector<1x32x16xf32> to vector<32x16xf32>
    %cst_29 = arith.constant dense<0.000000e+00> : vector<32x1xf32>
    %36 = tpu.matmul %35, %33, %cst_29 {dimension_numbers = #tpu.dot_dimension_numbers<[1], [0], [0], [1], [0, 0, 1, 1], [], []>} : vector<32x16xf32>, vector<16x1xf32>, vector<32x1xf32> -> vector<32x1xf32>
    %37 = vector.extract_strided_slice %36 {offsets = [0, 0], sizes = [8, 1], strides = [1, 1]} : vector<32x1xf32> to vector<8x1xf32>
    %38 = vector.extract_strided_slice %36 {offsets = [8, 0], sizes = [8, 1], strides = [1, 1]} : vector<32x1xf32> to vector<8x1xf32>
    %c0_30 = arith.constant 0 : index
    %c0_31 = arith.constant 0 : index
    %c0_32 = arith.constant 0 : index
    %39 = vector.load %arg10[%c0_30, %c0_31, %c0_32] : memref<1x2x8xf32, #tpu.memory_space<vmem>>, vector<1x2x8xf32>
    %40 = vector.shape_cast %39 : vector<1x2x8xf32> to vector<2x8xf32>
    %c0_33 = arith.constant 0 : index
    %c0_34 = arith.constant 0 : index
    %c0_35 = arith.constant 0 : index
    %41 = vector.load %arg11[%c0_33, %c0_34, %c0_35] : memref<1x1x8xf32, #tpu.memory_space<vmem>>, vector<1x1x8xf32>
    %42 = vector.shape_cast %41 : vector<1x1x8xf32> to vector<1x8xf32>
    %43 = vector.extract_strided_slice %40 {offsets = [0, 0], sizes = [1, 8], strides = [1, 1]} : vector<2x8xf32> to vector<1x8xf32>
    %44 = vector.broadcast %37 : vector<8x1xf32> to vector<8x8xf32>
    %45 = vector.broadcast %43 : vector<1x8xf32> to vector<8x8xf32>
    %46 = arith.mulf %44, %45 : vector<8x8xf32>
    %47 = vector.extract_strided_slice %40 {offsets = [1, 0], sizes = [1, 8], strides = [1, 1]} : vector<2x8xf32> to vector<1x8xf32>
    %48 = vector.broadcast %38 : vector<8x1xf32> to vector<8x8xf32>
    %49 = vector.broadcast %47 : vector<1x8xf32> to vector<8x8xf32>
    %50 = arith.mulf %48, %49 : vector<8x8xf32>
    %51 = arith.addf %46, %50 : vector<8x8xf32>
    %52 = vector.broadcast %42 : vector<1x8xf32> to vector<8x8xf32>
    %53 = arith.addf %51, %52 : vector<8x8xf32>
    %54 = vector.extract_strided_slice %53 {offsets = [0, 0], sizes = [1, 8], strides = [1, 1]} : vector<8x8xf32> to vector<1x8xf32>
    %55 = vector.extract_strided_slice %53 {offsets = [1, 0], sizes = [1, 8], strides = [1, 1]} : vector<8x8xf32> to vector<1x8xf32>
    %56 = vector.extract_strided_slice %53 {offsets = [2, 0], sizes = [1, 8], strides = [1, 1]} : vector<8x8xf32> to vector<1x8xf32>
    %57 = vector.extract_strided_slice %53 {offsets = [3, 0], sizes = [1, 8], strides = [1, 1]} : vector<8x8xf32> to vector<1x8xf32>
    %58 = vector.extract_strided_slice %53 {offsets = [4, 0], sizes = [1, 8], strides = [1, 1]} : vector<8x8xf32> to vector<1x8xf32>
    %59 = vector.extract_strided_slice %53 {offsets = [5, 0], sizes = [1, 8], strides = [1, 1]} : vector<8x8xf32> to vector<1x8xf32>
    %60 = vector.extract_strided_slice %53 {offsets = [6, 0], sizes = [1, 8], strides = [1, 1]} : vector<8x8xf32> to vector<1x8xf32>
    %61 = vector.extract_strided_slice %53 {offsets = [7, 0], sizes = [1, 8], strides = [1, 1]} : vector<8x8xf32> to vector<1x8xf32>
    %62 = arith.minimumf %54, %55 : vector<1x8xf32>
    %63 = arith.maximumf %54, %55 : vector<1x8xf32>
    %64 = arith.minimumf %56, %57 : vector<1x8xf32>
    %65 = arith.maximumf %56, %57 : vector<1x8xf32>
    %66 = arith.minimumf %58, %59 : vector<1x8xf32>
    %67 = arith.maximumf %58, %59 : vector<1x8xf32>
    %68 = arith.minimumf %60, %61 : vector<1x8xf32>
    %69 = arith.maximumf %60, %61 : vector<1x8xf32>
    %70 = arith.minimumf %63, %64 : vector<1x8xf32>
    %71 = arith.maximumf %63, %64 : vector<1x8xf32>
    %72 = arith.minimumf %65, %66 : vector<1x8xf32>
    %73 = arith.maximumf %65, %66 : vector<1x8xf32>
    %74 = arith.minimumf %67, %68 : vector<1x8xf32>
    %75 = arith.maximumf %67, %68 : vector<1x8xf32>
    %76 = arith.minimumf %62, %70 : vector<1x8xf32>
    %77 = arith.maximumf %62, %70 : vector<1x8xf32>
    %78 = arith.minimumf %71, %72 : vector<1x8xf32>
    %79 = arith.maximumf %71, %72 : vector<1x8xf32>
    %80 = arith.minimumf %73, %74 : vector<1x8xf32>
    %81 = arith.maximumf %73, %74 : vector<1x8xf32>
    %82 = arith.minimumf %75, %69 : vector<1x8xf32>
    %83 = arith.maximumf %75, %69 : vector<1x8xf32>
    %84 = arith.minimumf %77, %78 : vector<1x8xf32>
    %85 = arith.maximumf %77, %78 : vector<1x8xf32>
    %86 = arith.minimumf %79, %80 : vector<1x8xf32>
    %87 = arith.maximumf %79, %80 : vector<1x8xf32>
    %88 = arith.minimumf %81, %82 : vector<1x8xf32>
    %89 = arith.maximumf %81, %82 : vector<1x8xf32>
    %90 = arith.minimumf %76, %84 : vector<1x8xf32>
    %91 = arith.maximumf %76, %84 : vector<1x8xf32>
    %92 = arith.minimumf %85, %86 : vector<1x8xf32>
    %93 = arith.maximumf %85, %86 : vector<1x8xf32>
    %94 = arith.minimumf %87, %88 : vector<1x8xf32>
    %95 = arith.maximumf %87, %88 : vector<1x8xf32>
    %96 = arith.minimumf %89, %83 : vector<1x8xf32>
    %97 = arith.maximumf %89, %83 : vector<1x8xf32>
    %98 = arith.minimumf %91, %92 : vector<1x8xf32>
    %99 = arith.maximumf %91, %92 : vector<1x8xf32>
    %100 = arith.minimumf %93, %94 : vector<1x8xf32>
    %101 = arith.maximumf %93, %94 : vector<1x8xf32>
    %102 = arith.minimumf %95, %96 : vector<1x8xf32>
    %103 = arith.maximumf %95, %96 : vector<1x8xf32>
    %104 = arith.minimumf %90, %98 : vector<1x8xf32>
    %105 = arith.maximumf %90, %98 : vector<1x8xf32>
    %106 = arith.minimumf %99, %100 : vector<1x8xf32>
    %107 = arith.maximumf %99, %100 : vector<1x8xf32>
    %108 = arith.minimumf %101, %102 : vector<1x8xf32>
    %109 = arith.maximumf %101, %102 : vector<1x8xf32>
    %110 = arith.minimumf %103, %97 : vector<1x8xf32>
    %111 = arith.maximumf %103, %97 : vector<1x8xf32>
    %112 = arith.minimumf %105, %106 : vector<1x8xf32>
    %113 = arith.maximumf %105, %106 : vector<1x8xf32>
    %114 = arith.minimumf %107, %108 : vector<1x8xf32>
    %115 = arith.maximumf %107, %108 : vector<1x8xf32>
    %116 = arith.minimumf %109, %110 : vector<1x8xf32>
    %117 = arith.maximumf %109, %110 : vector<1x8xf32>
    %118 = tpu.concatenate %104, %112, %113, %114, %115, %116, %117, %111 in 0 : vector<1x8xf32>, vector<1x8xf32>, vector<1x8xf32>, vector<1x8xf32>, vector<1x8xf32>, vector<1x8xf32>, vector<1x8xf32>, vector<1x8xf32> -> vector<8x8xf32>
    %119 = vector.extract_strided_slice %118 {offsets = [1, 0], sizes = [7, 8], strides = [1, 1]} : vector<8x8xf32> to vector<7x8xf32>
    %120 = vector.extract_strided_slice %118 {offsets = [0, 0], sizes = [7, 8], strides = [1, 1]} : vector<8x8xf32> to vector<7x8xf32>
    %121 = arith.subf %119, %120 : vector<7x8xf32>
    %122 = vector.extract_strided_slice %118 {offsets = [0, 0], sizes = [7, 8], strides = [1, 1]} : vector<8x8xf32> to vector<7x8xf32>
    %123 = vector.extract_strided_slice %118 {offsets = [0, 0], sizes = [1, 8], strides = [1, 1]} : vector<8x8xf32> to vector<1x8xf32>
    %124 = vector.broadcast %123 : vector<1x8xf32> to vector<7x8xf32>
    %125 = arith.subf %122, %124 : vector<7x8xf32>
    %cst_36 = arith.constant dense<0.000000e+00> : vector<8xf32>
    %126 = vector.multi_reduction <add>, %121, %cst_36 [0] : vector<7x8xf32> to vector<8xf32>
    %127 = vector.shape_cast %126 : vector<8xf32> to vector<1x8xf32>
    %cst_37 = arith.constant 5.000000e-01 : f32
    %128 = vector.broadcast %cst_37 : f32 to vector<7x8xf32>
    %129 = arith.mulf %128, %121 : vector<7x8xf32>
    %130 = arith.addf %125, %129 : vector<7x8xf32>
    %cst_38 = arith.constant dense<0.000000e+00> : vector<8x8xf32>
    %131 = tpu.matmul %130, %121, %cst_38 {dimension_numbers = #tpu.dot_dimension_numbers<[0], [0], [1], [1], [0, 1, 1, 1], [], []>} : vector<7x8xf32>, vector<7x8xf32>, vector<8x8xf32> -> vector<8x8xf32>
    %132 = tpu.concatenate %127, %131 in 0 : vector<1x8xf32>, vector<8x8xf32> -> vector<9x8xf32>
    %c0_39 = arith.constant 0 : index
    %c0_40 = arith.constant 0 : index
    %c0_41 = arith.constant 0 : index
    %c0_42 = arith.constant 0 : index
    %133 = vector.load %arg14[%c0_39, %c0_40, %c0_41, %c0_42] : memref<1x1x9x8xf32, #tpu.memory_space<vmem>>, vector<1x1x9x8xf32>
    %134 = vector.shape_cast %133 : vector<1x1x9x8xf32> to vector<9x8xf32>
    %135 = vector.shape_cast %132 : vector<9x8xf32> to vector<1x1x9x8xf32>
    tpu.vector_store %arg14[%c0_39, %c0_40, %c0_41, %c0_42], %135 {strides = array<i32>} : memref<1x1x9x8xf32, #tpu.memory_space<vmem>>, vector<1x1x9x8xf32>,
    %136 = vector.extract_strided_slice %36 {offsets = [16, 0], sizes = [8, 1], strides = [1, 1]} : vector<32x1xf32> to vector<8x1xf32>
    %137 = vector.extract_strided_slice %36 {offsets = [24, 0], sizes = [8, 1], strides = [1, 1]} : vector<32x1xf32> to vector<8x1xf32>
    %c0_43 = arith.constant 0 : index
    %c0_44 = arith.constant 0 : index
    %c0_45 = arith.constant 0 : index
    %138 = vector.load %arg12[%c0_43, %c0_44, %c0_45] : memref<1x2x8xf32, #tpu.memory_space<vmem>>, vector<1x2x8xf32>
    %139 = vector.shape_cast %138 : vector<1x2x8xf32> to vector<2x8xf32>
    %c0_46 = arith.constant 0 : index
    %c0_47 = arith.constant 0 : index
    %c0_48 = arith.constant 0 : index
    %140 = vector.load %arg13[%c0_46, %c0_47, %c0_48] : memref<1x1x8xf32, #tpu.memory_space<vmem>>, vector<1x1x8xf32>
    %141 = vector.shape_cast %140 : vector<1x1x8xf32> to vector<1x8xf32>
    %142 = vector.extract_strided_slice %139 {offsets = [0, 0], sizes = [1, 8], strides = [1, 1]} : vector<2x8xf32> to vector<1x8xf32>
    %143 = vector.broadcast %136 : vector<8x1xf32> to vector<8x8xf32>
    %144 = vector.broadcast %142 : vector<1x8xf32> to vector<8x8xf32>
    %145 = arith.mulf %143, %144 : vector<8x8xf32>
    %146 = vector.extract_strided_slice %139 {offsets = [1, 0], sizes = [1, 8], strides = [1, 1]} : vector<2x8xf32> to vector<1x8xf32>
    %147 = vector.broadcast %137 : vector<8x1xf32> to vector<8x8xf32>
    %148 = vector.broadcast %146 : vector<1x8xf32> to vector<8x8xf32>
    %149 = arith.mulf %147, %148 : vector<8x8xf32>
    %150 = arith.addf %145, %149 : vector<8x8xf32>
    %151 = vector.broadcast %141 : vector<1x8xf32> to vector<8x8xf32>
    %152 = arith.addf %150, %151 : vector<8x8xf32>
    %153 = vector.extract_strided_slice %152 {offsets = [0, 0], sizes = [1, 8], strides = [1, 1]} : vector<8x8xf32> to vector<1x8xf32>
    %154 = vector.extract_strided_slice %152 {offsets = [1, 0], sizes = [1, 8], strides = [1, 1]} : vector<8x8xf32> to vector<1x8xf32>
    %155 = vector.extract_strided_slice %152 {offsets = [2, 0], sizes = [1, 8], strides = [1, 1]} : vector<8x8xf32> to vector<1x8xf32>
    %156 = vector.extract_strided_slice %152 {offsets = [3, 0], sizes = [1, 8], strides = [1, 1]} : vector<8x8xf32> to vector<1x8xf32>
    %157 = vector.extract_strided_slice %152 {offsets = [4, 0], sizes = [1, 8], strides = [1, 1]} : vector<8x8xf32> to vector<1x8xf32>
    %158 = vector.extract_strided_slice %152 {offsets = [5, 0], sizes = [1, 8], strides = [1, 1]} : vector<8x8xf32> to vector<1x8xf32>
    %159 = vector.extract_strided_slice %152 {offsets = [6, 0], sizes = [1, 8], strides = [1, 1]} : vector<8x8xf32> to vector<1x8xf32>
    %160 = vector.extract_strided_slice %152 {offsets = [7, 0], sizes = [1, 8], strides = [1, 1]} : vector<8x8xf32> to vector<1x8xf32>
    %161 = arith.minimumf %153, %154 : vector<1x8xf32>
    %162 = arith.maximumf %153, %154 : vector<1x8xf32>
    %163 = arith.minimumf %155, %156 : vector<1x8xf32>
    %164 = arith.maximumf %155, %156 : vector<1x8xf32>
    %165 = arith.minimumf %157, %158 : vector<1x8xf32>
    %166 = arith.maximumf %157, %158 : vector<1x8xf32>
    %167 = arith.minimumf %159, %160 : vector<1x8xf32>
    %168 = arith.maximumf %159, %160 : vector<1x8xf32>
    %169 = arith.minimumf %162, %163 : vector<1x8xf32>
    %170 = arith.maximumf %162, %163 : vector<1x8xf32>
    %171 = arith.minimumf %164, %165 : vector<1x8xf32>
    %172 = arith.maximumf %164, %165 : vector<1x8xf32>
    %173 = arith.minimumf %166, %167 : vector<1x8xf32>
    %174 = arith.maximumf %166, %167 : vector<1x8xf32>
    %175 = arith.minimumf %161, %169 : vector<1x8xf32>
    %176 = arith.maximumf %161, %169 : vector<1x8xf32>
    %177 = arith.minimumf %170, %171 : vector<1x8xf32>
    %178 = arith.maximumf %170, %171 : vector<1x8xf32>
    %179 = arith.minimumf %172, %173 : vector<1x8xf32>
    %180 = arith.maximumf %172, %173 : vector<1x8xf32>
    %181 = arith.minimumf %174, %168 : vector<1x8xf32>
    %182 = arith.maximumf %174, %168 : vector<1x8xf32>
    %183 = arith.minimumf %176, %177 : vector<1x8xf32>
    %184 = arith.maximumf %176, %177 : vector<1x8xf32>
    %185 = arith.minimumf %178, %179 : vector<1x8xf32>
    %186 = arith.maximumf %178, %179 : vector<1x8xf32>
    %187 = arith.minimumf %180, %181 : vector<1x8xf32>
    %188 = arith.maximumf %180, %181 : vector<1x8xf32>
    %189 = arith.minimumf %175, %183 : vector<1x8xf32>
    %190 = arith.maximumf %175, %183 : vector<1x8xf32>
    %191 = arith.minimumf %184, %185 : vector<1x8xf32>
    %192 = arith.maximumf %184, %185 : vector<1x8xf32>
    %193 = arith.minimumf %186, %187 : vector<1x8xf32>
    %194 = arith.maximumf %186, %187 : vector<1x8xf32>
    %195 = arith.minimumf %188, %182 : vector<1x8xf32>
    %196 = arith.maximumf %188, %182 : vector<1x8xf32>
    %197 = arith.minimumf %190, %191 : vector<1x8xf32>
    %198 = arith.maximumf %190, %191 : vector<1x8xf32>
    %199 = arith.minimumf %192, %193 : vector<1x8xf32>
    %200 = arith.maximumf %192, %193 : vector<1x8xf32>
    %201 = arith.minimumf %194, %195 : vector<1x8xf32>
    %202 = arith.maximumf %194, %195 : vector<1x8xf32>
    %203 = arith.minimumf %189, %197 : vector<1x8xf32>
    %204 = arith.maximumf %189, %197 : vector<1x8xf32>
    %205 = arith.minimumf %198, %199 : vector<1x8xf32>
    %206 = arith.maximumf %198, %199 : vector<1x8xf32>
    %207 = arith.minimumf %200, %201 : vector<1x8xf32>
    %208 = arith.maximumf %200, %201 : vector<1x8xf32>
    %209 = arith.minimumf %202, %196 : vector<1x8xf32>
    %210 = arith.maximumf %202, %196 : vector<1x8xf32>
    %211 = arith.minimumf %204, %205 : vector<1x8xf32>
    %212 = arith.maximumf %204, %205 : vector<1x8xf32>
    %213 = arith.minimumf %206, %207 : vector<1x8xf32>
    %214 = arith.maximumf %206, %207 : vector<1x8xf32>
    %215 = arith.minimumf %208, %209 : vector<1x8xf32>
    %216 = arith.maximumf %208, %209 : vector<1x8xf32>
    %217 = tpu.concatenate %203, %211, %212, %213, %214, %215, %216, %210 in 0 : vector<1x8xf32>, vector<1x8xf32>, vector<1x8xf32>, vector<1x8xf32>, vector<1x8xf32>, vector<1x8xf32>, vector<1x8xf32>, vector<1x8xf32> -> vector<8x8xf32>
    %218 = vector.extract_strided_slice %217 {offsets = [1, 0], sizes = [7, 8], strides = [1, 1]} : vector<8x8xf32> to vector<7x8xf32>
    %219 = vector.extract_strided_slice %217 {offsets = [0, 0], sizes = [7, 8], strides = [1, 1]} : vector<8x8xf32> to vector<7x8xf32>
    %220 = arith.subf %218, %219 : vector<7x8xf32>
    %221 = vector.extract_strided_slice %217 {offsets = [0, 0], sizes = [7, 8], strides = [1, 1]} : vector<8x8xf32> to vector<7x8xf32>
    %222 = vector.extract_strided_slice %217 {offsets = [0, 0], sizes = [1, 8], strides = [1, 1]} : vector<8x8xf32> to vector<1x8xf32>
    %223 = vector.broadcast %222 : vector<1x8xf32> to vector<7x8xf32>
    %224 = arith.subf %221, %223 : vector<7x8xf32>
    %cst_49 = arith.constant dense<0.000000e+00> : vector<8xf32>
    %225 = vector.multi_reduction <add>, %220, %cst_49 [0] : vector<7x8xf32> to vector<8xf32>
    %226 = vector.shape_cast %225 : vector<8xf32> to vector<1x8xf32>
    %cst_50 = arith.constant 5.000000e-01 : f32
    %227 = vector.broadcast %cst_50 : f32 to vector<7x8xf32>
    %228 = arith.mulf %227, %220 : vector<7x8xf32>
    %229 = arith.addf %224, %228 : vector<7x8xf32>
    %cst_51 = arith.constant dense<0.000000e+00> : vector<8x8xf32>
    %230 = tpu.matmul %229, %220, %cst_51 {dimension_numbers = #tpu.dot_dimension_numbers<[0], [0], [1], [1], [0, 1, 1, 1], [], []>} : vector<7x8xf32>, vector<7x8xf32>, vector<8x8xf32> -> vector<8x8xf32>
    %231 = tpu.concatenate %226, %230 in 0 : vector<1x8xf32>, vector<8x8xf32> -> vector<9x8xf32>
    %c0_52 = arith.constant 0 : index
    %c0_53 = arith.constant 0 : index
    %c0_54 = arith.constant 0 : index
    %c0_55 = arith.constant 0 : index
    %232 = vector.load %arg15[%c0_52, %c0_53, %c0_54, %c0_55] : memref<1x1x9x8xf32, #tpu.memory_space<vmem>>, vector<1x1x9x8xf32>
    %233 = vector.shape_cast %232 : vector<1x1x9x8xf32> to vector<9x8xf32>
    %234 = vector.shape_cast %231 : vector<9x8xf32> to vector<1x1x9x8xf32>
    tpu.vector_store %arg15[%c0_52, %c0_53, %c0_54, %c0_55], %234 {strides = array<i32>} : memref<1x1x9x8xf32, #tpu.memory_space<vmem>>, vector<1x1x9x8xf32>,
    return
  }
  func.func @transform_0(%arg0: i32, %arg1: i32) -> (i32, i32, i32) {
    %c0_i32 = arith.constant 0 : i32
    %c0_i32_0 = arith.constant 0 : i32
    %c0_i32_1 = arith.constant 0 : i32
    return %arg1, %c0_i32, %c0_i32_0 : i32, i32, i32
  }
  func.func @transform_1(%arg0: i32, %arg1: i32) -> (i32, i32, i32) {
    %c0_i32 = arith.constant 0 : i32
    %c0_i32_0 = arith.constant 0 : i32
    %c0_i32_1 = arith.constant 0 : i32
    return %arg0, %c0_i32, %c0_i32_0 : i32, i32, i32
  }
  func.func @transform_2(%arg0: i32, %arg1: i32) -> (i32, i32, i32) {
    %c0_i32 = arith.constant 0 : i32
    %c0_i32_0 = arith.constant 0 : i32
    %c0_i32_1 = arith.constant 0 : i32
    return %arg0, %c0_i32, %c0_i32_0 : i32, i32, i32
  }
  func.func @transform_3(%arg0: i32, %arg1: i32) -> (i32, i32, i32, i32) {
    %c0_i32 = arith.constant 0 : i32
    %c0_i32_0 = arith.constant 0 : i32
    %c0_i32_1 = arith.constant 0 : i32
    %c0_i32_2 = arith.constant 0 : i32
    return %arg0, %c0_i32, %c0_i32_0, %c0_i32_1 : i32, i32, i32, i32
  }
  func.func @transform_4(%arg0: i32, %arg1: i32) -> (i32, i32, i32, i32) {
    %c0_i32 = arith.constant 0 : i32
    %c0_i32_0 = arith.constant 0 : i32
    %c0_i32_1 = arith.constant 0 : i32
    %c0_i32_2 = arith.constant 0 : i32
    return %arg0, %c0_i32, %c0_i32_0, %c0_i32_1 : i32, i32, i32, i32
  }
  func.func @transform_5(%arg0: i32, %arg1: i32) -> (i32, i32, i32) {
    %c0_i32 = arith.constant 0 : i32
    %c0_i32_0 = arith.constant 0 : i32
    %c0_i32_1 = arith.constant 0 : i32
    return %arg0, %c0_i32, %c0_i32_0 : i32, i32, i32
  }
  func.func @transform_6(%arg0: i32, %arg1: i32) -> (i32, i32, i32) {
    %c0_i32 = arith.constant 0 : i32
    %c0_i32_0 = arith.constant 0 : i32
    %c0_i32_1 = arith.constant 0 : i32
    return %arg0, %c0_i32, %c0_i32_0 : i32, i32, i32
  }
  func.func @transform_7(%arg0: i32, %arg1: i32) -> (i32, i32, i32) {
    %c0_i32 = arith.constant 0 : i32
    %c0_i32_0 = arith.constant 0 : i32
    %c0_i32_1 = arith.constant 0 : i32
    return %arg1, %c0_i32, %c0_i32_0 : i32, i32, i32
  }
  func.func @transform_8(%arg0: i32, %arg1: i32) -> (i32, i32, i32) {
    %c0_i32 = arith.constant 0 : i32
    %c0_i32_0 = arith.constant 0 : i32
    %c0_i32_1 = arith.constant 0 : i32
    return %arg0, %c0_i32, %c0_i32_0 : i32, i32, i32
  }
  func.func @transform_9(%arg0: i32, %arg1: i32) -> (i32, i32, i32) {
    %c0_i32 = arith.constant 0 : i32
    %c0_i32_0 = arith.constant 0 : i32
    %c0_i32_1 = arith.constant 0 : i32
    return %arg0, %c0_i32, %c0_i32_0 : i32, i32, i32
  }
  func.func @transform_10(%arg0: i32, %arg1: i32) -> (i32, i32, i32) {
    %c0_i32 = arith.constant 0 : i32
    %c0_i32_0 = arith.constant 0 : i32
    %c0_i32_1 = arith.constant 0 : i32
    return %arg0, %c0_i32, %c0_i32_0 : i32, i32, i32
  }
  func.func @transform_11(%arg0: i32, %arg1: i32) -> (i32, i32, i32) {
    %c0_i32 = arith.constant 0 : i32
    %c0_i32_0 = arith.constant 0 : i32
    %c0_i32_1 = arith.constant 0 : i32
    return %arg0, %c0_i32, %c0_i32_0 : i32, i32, i32
  }
  func.func @transform_12(%arg0: i32, %arg1: i32) -> (i32, i32, i32, i32) {
    %c0_i32 = arith.constant 0 : i32
    %c0_i32_0 = arith.constant 0 : i32
    %c0_i32_1 = arith.constant 0 : i32
    return %arg0, %arg1, %c0_i32, %c0_i32_0 : i32, i32, i32, i32
  }
  func.func @transform_13(%arg0: i32, %arg1: i32) -> (i32, i32, i32, i32) {
    %c0_i32 = arith.constant 0 : i32
    %c0_i32_0 = arith.constant 0 : i32
    %c0_i32_1 = arith.constant 0 : i32
    return %arg0, %arg1, %c0_i32, %c0_i32_0 : i32, i32, i32, i32
  }
}

module attributes {stable_mosaic.version = 11 : i64} {
  func.func @_final_kernel(%arg0: i32, %arg1: memref<2x288xf32, #tpu.memory_space<vmem>>, %arg2: memref<1x288xf32, #tpu.memory_space<vmem>>, %arg3: memref<1x1xf32, #tpu.memory_space<vmem>>, %arg4: memref<2x1xf32, #tpu.memory_space<vmem>>) attributes {dimension_semantics = [#tpu.dimension_semantics<arbitrary>], iteration_bounds = array<i64: 1>, scalar_prefetch = 0 : i64, scratch_operands = 0 : i64, tpu.core_type = #tpu.core_type<tc>, window_params = [{pipeline_mode = #tpu.pipeline_mode<synchronous>, transform_indices = @transform_0, window_bounds = array<i64: 2, 288>}, {pipeline_mode = #tpu.pipeline_mode<synchronous>, transform_indices = @transform_1, window_bounds = array<i64: 1, 288>}, {pipeline_mode = #tpu.pipeline_mode<synchronous>, transform_indices = @transform_2, window_bounds = array<i64: 1, 1>}, {pipeline_mode = #tpu.pipeline_mode<synchronous>, transform_indices = @transform_3, window_bounds = array<i64: 2, 1>}]} {
    %c0 = arith.constant 0 : index
    %c0_0 = arith.constant 0 : index
    %0 = vector.load %arg1[%c0, %c0_0] : memref<2x288xf32, #tpu.memory_space<vmem>>, vector<2x288xf32>
    %c0_1 = arith.constant 0 : index
    %c0_2 = arith.constant 0 : index
    %1 = vector.load %arg2[%c0_1, %c0_2] : memref<1x288xf32, #tpu.memory_space<vmem>>, vector<1x288xf32>
    %2 = vector.broadcast %1 : vector<1x288xf32> to vector<2x288xf32>
    %3 = arith.mulf %0, %2 : vector<2x288xf32>
    %cst = arith.constant dense<0.000000e+00> : vector<2xf32>
    %4 = vector.multi_reduction <add>, %3, %cst [1] : vector<2x288xf32> to vector<2xf32>
    %5 = vector.shape_cast %4 : vector<2xf32> to vector<2x1xf32>
    %c0_3 = arith.constant 0 : index
    %c0_4 = arith.constant 0 : index
    %6 = vector.load %arg3[%c0_3, %c0_4] : memref<1x1xf32, #tpu.memory_space<vmem>>, vector<1x1xf32>
    %7 = vector.broadcast %6 : vector<1x1xf32> to vector<2x1xf32>
    %8 = arith.addf %5, %7 : vector<2x1xf32>
    %c0_5 = arith.constant 0 : index
    %c0_6 = arith.constant 0 : index
    %9 = vector.load %arg4[%c0_5, %c0_6] : memref<2x1xf32, #tpu.memory_space<vmem>>, vector<2x1xf32>
    tpu.vector_store %arg4[%c0_5, %c0_6], %8 {strides = array<i32>} : memref<2x1xf32, #tpu.memory_space<vmem>>, vector<2x1xf32>,
    return
  }
  func.func @transform_0(%arg0: i32) -> (i32, i32) {
    %c0_i32 = arith.constant 0 : i32
    %c0_i32_0 = arith.constant 0 : i32
    %c0_i32_1 = arith.constant 0 : i32
    return %c0_i32, %c0_i32_0 : i32, i32
  }
  func.func @transform_1(%arg0: i32) -> (i32, i32) {
    %c0_i32 = arith.constant 0 : i32
    %c0_i32_0 = arith.constant 0 : i32
    %c0_i32_1 = arith.constant 0 : i32
    return %c0_i32, %c0_i32_0 : i32, i32
  }
  func.func @transform_2(%arg0: i32) -> (i32, i32) {
    %c0_i32 = arith.constant 0 : i32
    %c0_i32_0 = arith.constant 0 : i32
    %c0_i32_1 = arith.constant 0 : i32
    return %c0_i32, %c0_i32_0 : i32, i32
  }
  func.func @transform_3(%arg0: i32) -> (i32, i32) {
    %c0_i32 = arith.constant 0 : i32
    %c0_i32_0 = arith.constant 0 : i32
    %c0_i32_1 = arith.constant 0 : i32
    return %c0_i32, %c0_i32_0 : i32, i32
  }
}

</mosaic_0001>

<llo_original>
// kernel: dgmslice_forward.3
$region0: #{dgmslice_forward.3}
  #allocation0 [shape = 'u32[]', space=smem, size = 0x4, offset = 0x4, fixed_abs, tag = 'smem constant byte address 0x4 - core index']
  #allocation1 [shape = 'u32[72,128]{1,0:T(1,128)}', space=vmem, size = 0x9000, scoped, tag = 'internal scratch']
  #allocation2 [shape = 'f32[1,1]{1,0:T(1,128)S(1)}', space=vmem, size = 0x200, scoped, tag = 'scoped memory for dgmslice_forward.3']
  %s0 = inlined_call_operand.vmem [shape: f32[2,288], index: 0, kind: input, shape index: {}]
  %s1 = inlined_call_operand.vmem [shape: f32[1,288], index: 1, kind: input, shape index: {}]
  %s2 = inlined_call_operand.<no memory space> [shape: f32[1,1], index: 2, kind: input, shape index: {}]
  %s3 = inlined_call_operand.vmem [shape: f32[2,1], index: 3, kind: output, shape index: {}]
  %s4 = sld [smem:[#allocation0]]
  $region22: #{dgmslice_forward.3} parent=0
    _
  %s6 = ssub.s32 1, %s4
  %s7 = scalar_select 0, %s6, %s4
  %v8 = vstv %s2
  %9 = vst [vmem:[#allocation2] sm:$0x1] %v8
  // Predicated region
  $region2: #{dgmslice_forward.3} parent=0 // pred_check
    _
  $region3: #{dgmslice_forward.3} parent=0 // pred_check_branch
    %11 = sbr.rel (0) target = $region5
  $region4: #{dgmslice_forward.3} parent=0 // pred_region
    _
  $region5: #{dgmslice_forward.3} parent=0 // pred_fallthru
    _
  // Predicated region
  $region6: #{dgmslice_forward.3} parent=0 // pred_check
    _
  $region7: #{dgmslice_forward.3} parent=0 // pred_check_branch
    %13 = sbr.rel (0) target = $region9
  $region8: #{dgmslice_forward.3} parent=0 // pred_region
    _
  $region9: #{dgmslice_forward.3} parent=0 // pred_fallthru
    _
  // Predicated region
  $region10: #{dgmslice_forward.3} parent=0 // pred_check
    _
  $region11: #{dgmslice_forward.3} parent=0 // pred_check_branch
    %15 = sbr.rel (0) target = $region13
  $region12: #{dgmslice_forward.3} parent=0 // pred_region
    _
  $region13: #{dgmslice_forward.3} parent=0 // pred_fallthru
    _
  %v16 = vld [vmem:[%s0] sm:$0x3f]
  %v17 = vld [vmem:[%s1] sm:$0x7]
  %v19 = vperm.slane %v17, 0
  %v20 = vperm.slane %v17, 1
  %v21 = vperm.slane %v17, 2
  %v22 = vrot.slane %v20, 6
  %v23 = vrot.slane %v21, 4
  %vm24 = vcmask 1041408
  %v25 = vsel %vm24, %v19, %v22
  %vm26 = vcmask 1043456
  %v27 = vsel %vm26, %v25, %v23
  %v29 = vmul.f32 %v16, %v27
  %31 = vst [vmem:[#allocation1] ss:$4 sm:$0xff] %v29
  %v32 = vld.sshfl [vmem:[#allocation1] sm:$0xff pattern:$0x73625140]
  %v33 = vld.sshfl [vmem:[#allocation1 + $0x8] sm:$0xff pattern:$0x73625140]
  %v34 = vld.sshfl [vmem:[#allocation1 + $0x10] sm:$0xff pattern:$0x73625140]
  %v38 = vsel %vm24, %v32, 0.0
  %v39 = vsel %vm24, %v33, 0.0
  %v40 = vadd.f32 %v38, %v39
  %vm41 = vcmask 254976
  %v42 = vsel %vm41, %v34, 0.0
  %v43 = vadd.f32 %v40, %v42
  %44 = vadd.xlane.f32.xlu0 %v43
  %v45 = vpop.xlane.xlu0 %44
  %v46 = vld [vmem:[#allocation2] sm:$0x1]
  %v48 = vperm.slane %v46, 0
  %v50 = vadd.f32 %v45, %v48
  %vm51 = vcmask 1024
  %52 = vst.msk [vmem:[%s3] sm:$0x3] %vm51, %v50
  // Predicated region
  $region14: #{dgmslice_forward.3} parent=0 // pred_check
    _
  $region15: #{dgmslice_forward.3} parent=0 // pred_check_branch
    %54 = sbr.rel (0) target = $region17
  $region16: #{dgmslice_forward.3} parent=0 // pred_region
    _
  $region17: #{dgmslice_forward.3} parent=0 // pred_fallthru
    _
  // Predicated region
  $region18: #{dgmslice_forward.3} parent=0 // pred_check
    _
  $region19: #{dgmslice_forward.3} parent=0 // pred_check_branch
    %56 = sbr.rel (0) target = $region21
  $region20: #{dgmslice_forward.3} parent=0 // pred_region
    _
  $region21: #{dgmslice_forward.3} parent=0 // pred_fallthru
    _

// kernel: dgmslice_forward.2
$region0: #{dgmslice_forward.2}
  #allocation0 [shape = 'u32[]', space=smem, size = 0x4, offset = 0x4, fixed_abs, tag = 'smem constant byte address 0x4 - core index']
  #allocation1 [shape = 'u32[72,128]{1,0:T(1,128)}', space=vmem, size = 0x9000, scoped, tag = 'internal scratch']
  %s0 = inlined_call_operand.vmem [shape: f32[2,16,1], index: 0, kind: input, shape index: {}]
  %s1 = inlined_call_operand.vmem [shape: f32[2,1,32], index: 1, kind: input, shape index: {}]
  %s2 = inlined_call_operand.vmem [shape: f32[2,1,32], index: 2, kind: input, shape index: {}]
  %s3 = inlined_call_operand.vmem [shape: f32[2,1,32,32], index: 3, kind: input, shape index: {}]
  %s4 = inlined_call_operand.vmem [shape: f32[2,1,1,32], index: 4, kind: input, shape index: {}]
  %s5 = inlined_call_operand.vmem [shape: f32[2,1,32], index: 5, kind: input, shape index: {}]
  %s6 = inlined_call_operand.vmem [shape: f32[2,1,1], index: 6, kind: input, shape index: {}]
  %s7 = inlined_call_operand.vmem [shape: f32[2,32,16], index: 7, kind: input, shape index: {}]
  %s8 = inlined_call_operand.vmem [shape: f32[2,2,8], index: 8, kind: input, shape index: {}]
  %s9 = inlined_call_operand.vmem [shape: f32[2,1,8], index: 9, kind: input, shape index: {}]
  %s10 = inlined_call_operand.vmem [shape: f32[2,2,8], index: 10, kind: input, shape index: {}]
  %s11 = inlined_call_operand.vmem [shape: f32[2,1,8], index: 11, kind: input, shape index: {}]
  %s12 = inlined_call_operand.vmem [shape: f32[2,2,9,8], index: 12, kind: output, shape index: {0}]
  %s13 = inlined_call_operand.vmem [shape: f32[2,2,9,8], index: 13, kind: output, shape index: {1}]
  %14 = xla_tuple %s12, %s13
  %s15 = sld [smem:[#allocation0]]
  $region89: #{dgmslice_forward.2} parent=0
    _
  %s17 = ssub.s32 1, %s15
  %s18 = scalar_select 0, %s17, %s15
  loop: start=0, step=1, limit=6
  $region2: #{dgmslice_forward.2} parent=0 // loop_pre_header
    _
  $region3: #{dgmslice_forward.2} parent=0 // loop_header
    %s20 = sphi 0, %s24
    %p21 = scmp.ge.s32.totalorder %s20, 6
    %s27 = sphi 0, %s39
    %s28 = sphi 0, %s35
    %s29 = sphi 0, %s27
    %s30 = sphi 0, %s28
    %s31 = sphi 0, %s29
    %s32 = sphi 0, %s30
    %s42 = sphi 0, %s44
    %s45 = sphi 0, %s42
    %s46 = sphi 0, %s45
    %s62 = sphi 0, %s46
    %s68 = sphi 0, %s70
    %s71 = sphi 0, %s68
    %s72 = sphi 0, %s71
    %s88 = sphi 0, %s72
    %s94 = sphi 0, %s96
    %s97 = sphi 0, %s94
    %s98 = sphi 0, %s97
    %s114 = sphi 0, %s98
    %s120 = sphi 0, %s122
    %s123 = sphi 0, %s120
    %s124 = sphi 0, %s123
    %s140 = sphi 0, %s124
    %s146 = sphi 0, %s148
    %s149 = sphi 0, %s146
    %s150 = sphi 0, %s149
    %s166 = sphi 0, %s150
    %s172 = sphi 0, %s174
    %s175 = sphi 0, %s172
    %s176 = sphi 0, %s175
    %s192 = sphi 0, %s176
    %s198 = sphi 0, %s200
    %s201 = sphi 0, %s198
    %s202 = sphi 0, %s201
    %s218 = sphi 0, %s202
    %s224 = sphi 0, %s226
    %s227 = sphi 0, %s224
    %s228 = sphi 0, %s227
    %s244 = sphi 0, %s228
    %s250 = sphi 0, %s252
    %s253 = sphi 0, %s250
    %s254 = sphi 0, %s253
    %s270 = sphi 0, %s254
    %s276 = sphi 0, %s278
    %s279 = sphi 0, %s276
    %s280 = sphi 0, %s279
    %s296 = sphi 0, %s280
    %s302 = sphi 0, %s304
    %s305 = sphi 0, %s302
    %s306 = sphi 0, %s305
    %s322 = sphi 0, %s306
    %s328 = sphi 0, %s330
    %s331 = sphi 0, %s328
    %s332 = sphi 0, %s331
    %s348 = sphi 0, %s332
    %s356 = sphi 0, %s358
    %s359 = sphi 0, %s356
    %s360 = sphi 0, %s359
    %s376 = sphi 0, %s360
    %s384 = sphi 0, %s386
    %s387 = sphi 0, %s384
    %s388 = sphi 0, %s387
    %s404 = sphi 0, %s388
  $region4: #{dgmslice_forward.2} parent=0 // loop_header_branch
    %23 = sbr.rel (%p21) target = $region8
  $region5: #{dgmslice_forward.2} parent=0 // loop_body
    %s25 = ssub.s32 %s20, 1
    %s26 = ssub.s32 %s20, 2
    %s33 = sadd.s32 1, %s28
    %p34 = scmp.ge.s32.totalorder %s33, 2
    %s35 = scalar_select %p34, 0, %s33
    %s36 = sadd.s32 1, %s27
    %s37 = scalar_select %p34, %s36, %s27
    %p38 = scmp.ge.s32.totalorder %s37, 2
    %s39 = scalar_select %p38, 0, %s37
    %s40 = ssub.s32 %s28, %s35
    %p41 = scmp.eq.s32.totalorder %s40, 0
    %s43 = sadd.s32 %s42, 1
    %s44 = scalar_select %p41, %s42, %s43
    %p47 = pneg %p41
    %p48 = scmp.eq.s32.totalorder %s20, 3
    %p49 = por %p47, %p48
    %p50 = scmp.ne.s32.totalorder %s42, %s45
    %p51 = scmp.eq.s32.totalorder %s20, 0
    %p52 = por %p50, %p51
    %p53 = scmp.ne.s32.totalorder %s42, %s45
    %p54 = scmp.eq.s32.totalorder %s25, 3
    %p55 = por %p53, %p54
    %p56 = scmp.ne.s32.totalorder %s45, %s46
    %p57 = scmp.eq.s32.totalorder %s25, 0
    %p58 = por %p56, %p57
    %p59 = scmp.ne.s32.totalorder %s45, %s46
    %p60 = scmp.eq.s32.totalorder %s26, 3
    %p61 = por %p59, %p60
    %p63 = scmp.ne.s32.totalorder %s46, %s62
    %p64 = scmp.eq.s32.totalorder %s26, 0
    %p65 = por %p63, %p64
    %s66 = ssub.s32 %s27, %s39
    %p67 = scmp.eq.s32.totalorder %s66, 0
    %s69 = sadd.s32 %s68, 1
    %s70 = scalar_select %p67, %s68, %s69
    %p73 = pneg %p67
    %p74 = scmp.eq.s32.totalorder %s20, 3
    %p75 = por %p73, %p74
    %p76 = scmp.ne.s32.totalorder %s68, %s71
    %p77 = scmp.eq.s32.totalorder %s20, 0
    %p78 = por %p76, %p77
    %p79 = scmp.ne.s32.totalorder %s68, %s71
    %p80 = scmp.eq.s32.totalorder %s25, 3
    %p81 = por %p79, %p80
    %p82 = scmp.ne.s32.totalorder %s71, %s72
    %p83 = scmp.eq.s32.totalorder %s25, 0
    %p84 = por %p82, %p83
    %p85 = scmp.ne.s32.totalorder %s71, %s72
    %p86 = scmp.eq.s32.totalorder %s26, 3
    %p87 = por %p85, %p86
    %p89 = scmp.ne.s32.totalorder %s72, %s88
    %p90 = scmp.eq.s32.totalorder %s26, 0
    %p91 = por %p89, %p90
    %s92 = ssub.s32 %s27, %s39
    %p93 = scmp.eq.s32.totalorder %s92, 0
    %s95 = sadd.s32 %s94, 1
    %s96 = scalar_select %p93, %s94, %s95
    %p99 = pneg %p93
    %p100 = scmp.eq.s32.totalorder %s20, 3
    %p101 = por %p99, %p100
    %p102 = scmp.ne.s32.totalorder %s94, %s97
    %p103 = scmp.eq.s32.totalorder %s20, 0
    %p104 = por %p102, %p103
    %p105 = scmp.ne.s32.totalorder %s94, %s97
    %p106 = scmp.eq.s32.totalorder %s25, 3
    %p107 = por %p105, %p106
    %p108 = scmp.ne.s32.totalorder %s97, %s98
    %p109 = scmp.eq.s32.totalorder %s25, 0
    %p110 = por %p108, %p109
    %p111 = scmp.ne.s32.totalorder %s97, %s98
    %p112 = scmp.eq.s32.totalorder %s26, 3
    %p113 = por %p111, %p112
    %p115 = scmp.ne.s32.totalorder %s98, %s114
    %p116 = scmp.eq.s32.totalorder %s26, 0
    %p117 = por %p115, %p116
    %s118 = ssub.s32 %s27, %s39
    %p119 = scmp.eq.s32.totalorder %s118, 0
    %s121 = sadd.s32 %s120, 1
    %s122 = scalar_select %p119, %s120, %s121
    %p125 = pneg %p119
    %p126 = scmp.eq.s32.totalorder %s20, 3
    %p127 = por %p125, %p126
    %p128 = scmp.ne.s32.totalorder %s120, %s123
    %p129 = scmp.eq.s32.totalorder %s20, 0
    %p130 = por %p128, %p129
    %p131 = scmp.ne.s32.totalorder %s120, %s123
    %p132 = scmp.eq.s32.totalorder %s25, 3
    %p133 = por %p131, %p132
    %p134 = scmp.ne.s32.totalorder %s123, %s124
    %p135 = scmp.eq.s32.totalorder %s25, 0
    %p136 = por %p134, %p135
    %p137 = scmp.ne.s32.totalorder %s123, %s124
    %p138 = scmp.eq.s32.totalorder %s26, 3
    %p139 = por %p137, %p138
    %p141 = scmp.ne.s32.totalorder %s124, %s140
    %p142 = scmp.eq.s32.totalorder %s26, 0
    %p143 = por %p141, %p142
    %s144 = ssub.s32 %s27, %s39
    %p145 = scmp.eq.s32.totalorder %s144, 0
    %s147 = sadd.s32 %s146, 1
    %s148 = scalar_select %p145, %s146, %s147
    %p151 = pneg %p145
    %p152 = scmp.eq.s32.totalorder %s20, 3
    %p153 = por %p151, %p152
    %p154 = scmp.ne.s32.totalorder %s146, %s149
    %p155 = scmp.eq.s32.totalorder %s20, 0
    %p156 = por %p154, %p155
    %p157 = scmp.ne.s32.totalorder %s146, %s149
    %p158 = scmp.eq.s32.totalorder %s25, 3
    %p159 = por %p157, %p158
    %p160 = scmp.ne.s32.totalorder %s149, %s150
    %p161 = scmp.eq.s32.totalorder %s25, 0
    %p162 = por %p160, %p161
    %p163 = scmp.ne.s32.totalorder %s149, %s150
    %p164 = scmp.eq.s32.totalorder %s26, 3
    %p165 = por %p163, %p164
    %p167 = scmp.ne.s32.totalorder %s150, %s166
    %p168 = scmp.eq.s32.totalorder %s26, 0
    %p169 = por %p167, %p168
    %s170 = ssub.s32 %s27, %s39
    %p171 = scmp.eq.s32.totalorder %s170, 0
    %s173 = sadd.s32 %s172, 1
    %s174 = scalar_select %p171, %s172, %s173
    %p177 = pneg %p171
    %p178 = scmp.eq.s32.totalorder %s20, 3
    %p179 = por %p177, %p178
    %p180 = scmp.ne.s32.totalorder %s172, %s175
    %p181 = scmp.eq.s32.totalorder %s20, 0
    %p182 = por %p180, %p181
    %p183 = scmp.ne.s32.totalorder %s172, %s175
    %p184 = scmp.eq.s32.totalorder %s25, 3
    %p185 = por %p183, %p184
    %p186 = scmp.ne.s32.totalorder %s175, %s176
    %p187 = scmp.eq.s32.totalorder %s25, 0
    %p188 = por %p186, %p187
    %p189 = scmp.ne.s32.totalorder %s175, %s176
    %p190 = scmp.eq.s32.totalorder %s26, 3
    %p191 = por %p189, %p190
    %p193 = scmp.ne.s32.totalorder %s176, %s192
    %p194 = scmp.eq.s32.totalorder %s26, 0
    %p195 = por %p193, %p194
    %s196 = ssub.s32 %s27, %s39
    %p197 = scmp.eq.s32.totalorder %s196, 0
    %s199 = sadd.s32 %s198, 1
    %s200 = scalar_select %p197, %s198, %s199
    %p203 = pneg %p197
    %p204 = scmp.eq.s32.totalorder %s20, 3
    %p205 = por %p203, %p204
    %p206 = scmp.ne.s32.totalorder %s198, %s201
    %p207 = scmp.eq.s32.totalorder %s20, 0
    %p208 = por %p206, %p207
    %p209 = scmp.ne.s32.totalorder %s198, %s201
    %p210 = scmp.eq.s32.totalorder %s25, 3
    %p211 = por %p209, %p210
    %p212 = scmp.ne.s32.totalorder %s201, %s202
    %p213 = scmp.eq.s32.totalorder %s25, 0
    %p214 = por %p212, %p213
    %p215 = scmp.ne.s32.totalorder %s201, %s202
    %p216 = scmp.eq.s32.totalorder %s26, 3
    %p217 = por %p215, %p216
    %p219 = scmp.ne.s32.totalorder %s202, %s218
    %p220 = scmp.eq.s32.totalorder %s26, 0
    %p221 = por %p219, %p220
    %s222 = ssub.s32 %s28, %s35
    %p223 = scmp.eq.s32.totalorder %s222, 0
    %s225 = sadd.s32 %s224, 1
    %s226 = scalar_select %p223, %s224, %s225
    %p229 = pneg %p223
    %p230 = scmp.eq.s32.totalorder %s20, 3
    %p231 = por %p229, %p230
    %p232 = scmp.ne.s32.totalorder %s224, %s227
    %p233 = scmp.eq.s32.totalorder %s20, 0
    %p234 = por %p232, %p233
    %p235 = scmp.ne.s32.totalorder %s224, %s227
    %p236 = scmp.eq.s32.totalorder %s25, 3
    %p237 = por %p235, %p236
    %p238 = scmp.ne.s32.totalorder %s227, %s228
    %p239 = scmp.eq.s32.totalorder %s25, 0
    %p240 = por %p238, %p239
    %p241 = scmp.ne.s32.totalorder %s227, %s228
    %p242 = scmp.eq.s32.totalorder %s26, 3
    %p243 = por %p241, %p242
    %p245 = scmp.ne.s32.totalorder %s228, %s244
    %p246 = scmp.eq.s32.totalorder %s26, 0
    %p247 = por %p245, %p246
    %s248 = ssub.s32 %s27, %s39
    %p249 = scmp.eq.s32.totalorder %s248, 0
    %s251 = sadd.s32 %s250, 1
    %s252 = scalar_select %p249, %s250, %s251
    %p255 = pneg %p249
    %p256 = scmp.eq.s32.totalorder %s20, 3
    %p257 = por %p255, %p256
    %p258 = scmp.ne.s32.totalorder %s250, %s253
    %p259 = scmp.eq.s32.totalorder %s20, 0
    %p260 = por %p258, %p259
    %p261 = scmp.ne.s32.totalorder %s250, %s253
    %p262 = scmp.eq.s32.totalorder %s25, 3
    %p263 = por %p261, %p262
    %p264 = scmp.ne.s32.totalorder %s253, %s254
    %p265 = scmp.eq.s32.totalorder %s25, 0
    %p266 = por %p264, %p265
    %p267 = scmp.ne.s32.totalorder %s253, %s254
    %p268 = scmp.eq.s32.totalorder %s26, 3
    %p269 = por %p267, %p268
    %p271 = scmp.ne.s32.totalorder %s254, %s270
    %p272 = scmp.eq.s32.totalorder %s26, 0
    %p273 = por %p271, %p272
    %s274 = ssub.s32 %s27, %s39
    %p275 = scmp.eq.s32.totalorder %s274, 0
    %s277 = sadd.s32 %s276, 1
    %s278 = scalar_select %p275, %s276, %s277
    %p281 = pneg %p275
    %p282 = scmp.eq.s32.totalorder %s20, 3
    %p283 = por %p281, %p282
    %p284 = scmp.ne.s32.totalorder %s276, %s279
    %p285 = scmp.eq.s32.totalorder %s20, 0
    %p286 = por %p284, %p285
    %p287 = scmp.ne.s32.totalorder %s276, %s279
    %p288 = scmp.eq.s32.totalorder %s25, 3
    %p289 = por %p287, %p288
    %p290 = scmp.ne.s32.totalorder %s279, %s280
    %p291 = scmp.eq.s32.totalorder %s25, 0
    %p292 = por %p290, %p291
    %p293 = scmp.ne.s32.totalorder %s279, %s280
    %p294 = scmp.eq.s32.totalorder %s26, 3
    %p295 = por %p293, %p294
    %p297 = scmp.ne.s32.totalorder %s280, %s296
    %p298 = scmp.eq.s32.totalorder %s26, 0
    %p299 = por %p297, %p298
    %s300 = ssub.s32 %s27, %s39
    %p301 = scmp.eq.s32.totalorder %s300, 0
    %s303 = sadd.s32 %s302, 1
    %s304 = scalar_select %p301, %s302, %s303
    %p307 = pneg %p301
    %p308 = scmp.eq.s32.totalorder %s20, 3
    %p309 = por %p307, %p308
    %p310 = scmp.ne.s32.totalorder %s302, %s305
    %p311 = scmp.eq.s32.totalorder %s20, 0
    %p312 = por %p310, %p311
    %p313 = scmp.ne.s32.totalorder %s302, %s305
    %p314 = scmp.eq.s32.totalorder %s25, 3
    %p315 = por %p313, %p314
    %p316 = scmp.ne.s32.totalorder %s305, %s306
    %p317 = scmp.eq.s32.totalorder %s25, 0
    %p318 = por %p316, %p317
    %p319 = scmp.ne.s32.totalorder %s305, %s306
    %p320 = scmp.eq.s32.totalorder %s26, 3
    %p321 = por %p319, %p320
    %p323 = scmp.ne.s32.totalorder %s306, %s322
    %p324 = scmp.eq.s32.totalorder %s26, 0
    %p325 = por %p323, %p324
    %s326 = ssub.s32 %s27, %s39
    %p327 = scmp.eq.s32.totalorder %s326, 0
    %s329 = sadd.s32 %s328, 1
    %s330 = scalar_select %p327, %s328, %s329
    %p333 = pneg %p327
    %p334 = scmp.eq.s32.totalorder %s20, 3
    %p335 = por %p333, %p334
    %p336 = scmp.ne.s32.totalorder %s328, %s331
    %p337 = scmp.eq.s32.totalorder %s20, 0
    %p338 = por %p336, %p337
    %p339 = scmp.ne.s32.totalorder %s328, %s331
    %p340 = scmp.eq.s32.totalorder %s25, 3
    %p341 = por %p339, %p340
    %p342 = scmp.ne.s32.totalorder %s331, %s332
    %p343 = scmp.eq.s32.totalorder %s25, 0
    %p344 = por %p342, %p343
    %p345 = scmp.ne.s32.totalorder %s331, %s332
    %p346 = scmp.eq.s32.totalorder %s26, 3
    %p347 = por %p345, %p346
    %p349 = scmp.ne.s32.totalorder %s332, %s348
    %p350 = scmp.eq.s32.totalorder %s26, 0
    %p351 = por %p349, %p350
    %s352 = ssub.s32 %s27, %s39
    %s353 = ssub.s32 %s28, %s35
    %s354 = sor.u32 %s352, %s353
    %p355 = scmp.eq.s32.totalorder %s354, 0
    %s357 = sadd.s32 %s356, 1
    %s358 = scalar_select %p355, %s356, %s357
    %p361 = pneg %p355
    %p362 = scmp.eq.s32.totalorder %s20, 3
    %p363 = por %p361, %p362
    %p364 = scmp.ne.s32.totalorder %s356, %s359
    %p365 = scmp.eq.s32.totalorder %s20, 0
    %p366 = por %p364, %p365
    %p367 = scmp.ne.s32.totalorder %s356, %s359
    %p368 = scmp.eq.s32.totalorder %s25, 3
    %p369 = por %p367, %p368
    %p370 = scmp.ne.s32.totalorder %s359, %s360
    %p371 = scmp.eq.s32.totalorder %s25, 0
    %p372 = por %p370, %p371
    %p373 = scmp.ne.s32.totalorder %s359, %s360
    %p374 = scmp.eq.s32.totalorder %s26, 3
    %p375 = por %p373, %p374
    %p377 = scmp.ne.s32.totalorder %s360, %s376
    %p378 = scmp.eq.s32.totalorder %s26, 0
    %p379 = por %p377, %p378
    %s380 = ssub.s32 %s27, %s39
    %s381 = ssub.s32 %s28, %s35
    %s382 = sor.u32 %s380, %s381
    %p383 = scmp.eq.s32.totalorder %s382, 0
    %s385 = sadd.s32 %s384, 1
    %s386 = scalar_select %p383, %s384, %s385
    %p389 = pneg %p383
    %p390 = scmp.eq.s32.totalorder %s20, 3
    %p391 = por %p389, %p390
    %p392 = scmp.ne.s32.totalorder %s384, %s387
    %p393 = scmp.eq.s32.totalorder %s20, 0
    %p394 = por %p392, %p393
    %p395 = scmp.ne.s32.totalorder %s384, %s387
    %p396 = scmp.eq.s32.totalorder %s25, 3
    %p397 = por %p395, %p396
    %p398 = scmp.ne.s32.totalorder %s387, %s388
    %p399 = scmp.eq.s32.totalorder %s25, 0
    %p400 = por %p398, %p399
    %p401 = scmp.ne.s32.totalorder %s387, %s388
    %p402 = scmp.eq.s32.totalorder %s26, 3
    %p403 = por %p401, %p402
    %p405 = scmp.ne.s32.totalorder %s388, %s404
    %p406 = scmp.eq.s32.totalorder %s26, 0
    %p407 = por %p405, %p406
    %p408 = scmp.le.s32.totalorder 1, %s20
    %p409 = scmp.lt.s32.totalorder %s20, 5
    %p410 = pnand %p408, %p409
    %p411 = pneg %p410
    // Predicated region
    $region9: #{dgmslice_forward.2} parent=5 // pred_check
      _
    $region10: #{dgmslice_forward.2} parent=5 // pred_check_branch
      %413 = sbr.rel (%p410) target = $region12
    $region11: #{dgmslice_forward.2} parent=5 // pred_region
      %s414 = ssub.s32 %s20, 1
    $region12: #{dgmslice_forward.2} parent=5 // pred_fallthru
      _
    %p415 = scmp.lt.s32.totalorder %s20, 4
    // Predicated region
    $region13: #{dgmslice_forward.2} parent=5 // pred_check
      %p416 = pneg %p415
    $region14: #{dgmslice_forward.2} parent=5 // pred_check_branch
      %418 = sbr.rel (%p416) target = $region16
    $region15: #{dgmslice_forward.2} parent=5 // pred_region
      // Predicated region
      $region17: #{dgmslice_forward.2} parent=15 // pred_check
        %p419 = pneg %p52
      $region18: #{dgmslice_forward.2} parent=15 // pred_check_branch
        %421 = sbr.rel (%p419) target = $region20
      $region19: #{dgmslice_forward.2} parent=15 // pred_region
        %p422 = scmp.lt.s32.totalorder %s28, 1
        %s423 = scalar_select %p422, %s28, 1
        %s424 = smul.addr %s423, 2
        %s425 = smul.addr %s424, 8
        %s426 = scalar_lea.vmem %s0, %s425
      $region20: #{dgmslice_forward.2} parent=15 // pred_fallthru
        _
      // Predicated region
      $region21: #{dgmslice_forward.2} parent=15 // pred_check
        %p427 = pneg %p78
      $region22: #{dgmslice_forward.2} parent=15 // pred_check_branch
        %429 = sbr.rel (%p427) target = $region24
      $region23: #{dgmslice_forward.2} parent=15 // pred_region
        %p430 = scmp.lt.s32.totalorder %s27, 1
        %s431 = scalar_select %p430, %s27, 1
        %s432 = scalar_lea.vmem %s1, %s431
      $region24: #{dgmslice_forward.2} parent=15 // pred_fallthru
        _
      // Predicated region
      $region25: #{dgmslice_forward.2} parent=15 // pred_check
        %p433 = pneg %p104
      $region26: #{dgmslice_forward.2} parent=15 // pred_check_branch
        %435 = sbr.rel (%p433) target = $region28
      $region27: #{dgmslice_forward.2} parent=15 // pred_region
        %p436 = scmp.lt.s32.totalorder %s27, 1
        %s437 = scalar_select %p436, %s27, 1
        %s438 = scalar_lea.vmem %s2, %s437
      $region28: #{dgmslice_forward.2} parent=15 // pred_fallthru
        _
      // Predicated region
      $region29: #{dgmslice_forward.2} parent=15 // pred_check
        %p439 = pneg %p130
      $region30: #{dgmslice_forward.2} parent=15 // pred_check_branch
        %441 = sbr.rel (%p439) target = $region32
      $region31: #{dgmslice_forward.2} parent=15 // pred_region
        %p442 = scmp.lt.s32.totalorder %s27, 1
        %s443 = scalar_select %p442, %s27, 1
        %s444 = smul.addr %s443, 4
        %s445 = smul.addr %s444, 8
        %s446 = scalar_lea.vmem %s3, %s445
      $region32: #{dgmslice_forward.2} parent=15 // pred_fallthru
        _
      // Predicated region
      $region33: #{dgmslice_forward.2} parent=15 // pred_check
        %p447 = pneg %p156
      $region34: #{dgmslice_forward.2} parent=15 // pred_check_branch
        %449 = sbr.rel (%p447) target = $region36
      $region35: #{dgmslice_forward.2} parent=15 // pred_region
        %p450 = scmp.lt.s32.totalorder %s27, 1
        %s451 = scalar_select %p450, %s27, 1
        %s452 = scalar_lea.vmem %s4, %s451
      $region36: #{dgmslice_forward.2} parent=15 // pred_fallthru
        _
      // Predicated region
      $region37: #{dgmslice_forward.2} parent=15 // pred_check
        %p453 = pneg %p182
      $region38: #{dgmslice_forward.2} parent=15 // pred_check_branch
        %455 = sbr.rel (%p453) target = $region40
      $region39: #{dgmslice_forward.2} parent=15 // pred_region
        %p456 = scmp.lt.s32.totalorder %s27, 1
        %s457 = scalar_select %p456, %s27, 1
        %s458 = scalar_lea.vmem %s5, %s457
      $region40: #{dgmslice_forward.2} parent=15 // pred_fallthru
        _
      // Predicated region
      $region41: #{dgmslice_forward.2} parent=15 // pred_check
        %p459 = pneg %p208
      $region42: #{dgmslice_forward.2} parent=15 // pred_check_branch
        %461 = sbr.rel (%p459) target = $region44
      $region43: #{dgmslice_forward.2} parent=15 // pred_region
        %p462 = scmp.lt.s32.totalorder %s27, 1
        %s463 = scalar_select %p462, %s27, 1
        %s464 = scalar_lea.vmem %s6, %s463
      $region44: #{dgmslice_forward.2} parent=15 // pred_fallthru
        _
      // Predicated region
      $region45: #{dgmslice_forward.2} parent=15 // pred_check
        %p465 = pneg %p234
      $region46: #{dgmslice_forward.2} parent=15 // pred_check_branch
        %467 = sbr.rel (%p465) target = $region48
      $region47: #{dgmslice_forward.2} parent=15 // pred_region
        %p468 = scmp.lt.s32.totalorder %s28, 1
        %s469 = scalar_select %p468, %s28, 1
        %s470 = smul.addr %s469, 4
        %s471 = smul.addr %s470, 8
        %s472 = scalar_lea.vmem %s7, %s471
      $region48: #{dgmslice_forward.2} parent=15 // pred_fallthru
        _
      // Predicated region
      $region49: #{dgmslice_forward.2} parent=15 // pred_check
        %p473 = pneg %p260
      $region50: #{dgmslice_forward.2} parent=15 // pred_check_branch
        %475 = sbr.rel (%p473) target = $region52
      $region51: #{dgmslice_forward.2} parent=15 // pred_region
        %p476 = scmp.lt.s32.totalorder %s27, 1
        %s477 = scalar_select %p476, %s27, 1
        %s478 = smul.addr %s477, 2
        %s479 = scalar_lea.vmem %s8, %s478
      $region52: #{dgmslice_forward.2} parent=15 // pred_fallthru
        _
      // Predicated region
      $region53: #{dgmslice_forward.2} parent=15 // pred_check
        %p480 = pneg %p286
      $region54: #{dgmslice_forward.2} parent=15 // pred_check_branch
        %482 = sbr.rel (%p480) target = $region56
      $region55: #{dgmslice_forward.2} parent=15 // pred_region
        %p483 = scmp.lt.s32.totalorder %s27, 1
        %s484 = scalar_select %p483, %s27, 1
        %s485 = scalar_lea.vmem %s9, %s484
      $region56: #{dgmslice_forward.2} parent=15 // pred_fallthru
        _
      // Predicated region
      $region57: #{dgmslice_forward.2} parent=15 // pred_check
        %p486 = pneg %p312
      $region58: #{dgmslice_forward.2} parent=15 // pred_check_branch
        %488 = sbr.rel (%p486) target = $region60
      $region59: #{dgmslice_forward.2} parent=15 // pred_region
        %p489 = scmp.lt.s32.totalorder %s27, 1
        %s490 = scalar_select %p489, %s27, 1
        %s491 = smul.addr %s490, 2
        %s492 = scalar_lea.vmem %s10, %s491
      $region60: #{dgmslice_forward.2} parent=15 // pred_fallthru
        _
      // Predicated region
      $region61: #{dgmslice_forward.2} parent=15 // pred_check
        %p493 = pneg %p338
      $region62: #{dgmslice_forward.2} parent=15 // pred_check_branch
        %495 = sbr.rel (%p493) target = $region64
      $region63: #{dgmslice_forward.2} parent=15 // pred_region
        %p496 = scmp.lt.s32.totalorder %s27, 1
        %s497 = scalar_select %p496, %s27, 1
        %s498 = scalar_lea.vmem %s11, %s497
      $region64: #{dgmslice_forward.2} parent=15 // pred_fallthru
        _
    $region16: #{dgmslice_forward.2} parent=5 // pred_fallthru
      _
    %p499 = scmp.le.s32.totalorder 1, %s20
    %p500 = scmp.lt.s32.totalorder %s20, 5
    %p501 = pnand %p499, %p500
    %p502 = pneg %p501
    // Predicated region
    $region65: #{dgmslice_forward.2} parent=5 // pred_check
      _
    $region66: #{dgmslice_forward.2} parent=5 // pred_check_branch
      %504 = sbr.rel (%p501) target = $region68
    $region67: #{dgmslice_forward.2} parent=5 // pred_region
      %s505 = ssub.s32 %s20, 1
      %p506 = scmp.lt.s32.totalorder %s30, 1
      %s507 = scalar_select %p506, %s30, 1
      %s508 = smul.addr %s507, 2
      %s509 = smul.addr %s508, 8
      %s510 = scalar_lea.vmem %s0, %s509
      %p511 = pneg %p58
      %p512 = pneg %p55
      %p513 = scmp.lt.s32.totalorder %s29, 1
      %s514 = scalar_select %p513, %s29, 1
      %s515 = scalar_lea.vmem %s1, %s514
      %p516 = pneg %p84
      %p517 = pneg %p81
      %p518 = scmp.lt.s32.totalorder %s29, 1
      %s519 = scalar_select %p518, %s29, 1
      %s520 = scalar_lea.vmem %s2, %s519
      %p521 = pneg %p110
      %p522 = pneg %p107
      %p523 = scmp.lt.s32.totalorder %s29, 1
      %s524 = scalar_select %p523, %s29, 1
      %s525 = smul.addr %s524, 4
      %s526 = smul.addr %s525, 8
      %s527 = scalar_lea.vmem %s3, %s526
      %p528 = pneg %p136
      %p529 = pneg %p133
      %p530 = scmp.lt.s32.totalorder %s29, 1
      %s531 = scalar_select %p530, %s29, 1
      %s532 = scalar_lea.vmem %s4, %s531
      %p533 = pneg %p162
      %p534 = pneg %p159
      %p535 = scmp.lt.s32.totalorder %s29, 1
      %s536 = scalar_select %p535, %s29, 1
      %s537 = scalar_lea.vmem %s5, %s536
      %p538 = pneg %p188
      %p539 = pneg %p185
      %p540 = scmp.lt.s32.totalorder %s29, 1
      %s541 = scalar_select %p540, %s29, 1
      %s542 = scalar_lea.vmem %s6, %s541
      %p543 = pneg %p214
      %p544 = pneg %p211
      %p545 = scmp.lt.s32.totalorder %s30, 1
      %s546 = scalar_select %p545, %s30, 1
      %s547 = smul.addr %s546, 4
      %s548 = smul.addr %s547, 8
      %s549 = scalar_lea.vmem %s7, %s548
      %p550 = pneg %p240
      %p551 = pneg %p237
      %p552 = scmp.lt.s32.totalorder %s29, 1
      %s553 = scalar_select %p552, %s29, 1
      %s554 = smul.addr %s553, 2
      %s555 = scalar_lea.vmem %s8, %s554
      %p556 = pneg %p266
      %p557 = pneg %p263
      %p558 = scmp.lt.s32.totalorder %s29, 1
      %s559 = scalar_select %p558, %s29, 1
      %s560 = scalar_lea.vmem %s9, %s559
      %p561 = pneg %p292
      %p562 = pneg %p289
      %p563 = scmp.lt.s32.totalorder %s29, 1
      %s564 = scalar_select %p563, %s29, 1
      %s565 = smul.addr %s564, 2
      %s566 = scalar_lea.vmem %s10, %s565
      %p567 = pneg %p318
      %p568 = pneg %p315
      %p569 = scmp.lt.s32.totalorder %s29, 1
      %s570 = scalar_select %p569, %s29, 1
      %s571 = scalar_lea.vmem %s11, %s570
      %p572 = pneg %p344
      %p573 = pneg %p341
      %p574 = pneg %p372
      %p575 = pneg %p369
      %p576 = scmp.lt.s32.totalorder %s29, 1
      %s577 = scalar_select %p576, %s29, 1
      %p578 = scmp.lt.s32.totalorder %s30, 1
      %s579 = scalar_select %p578, %s30, 1
      %s580 = smul.addr %s579, 2
      %s581 = smul.addr %s577, 4
      %s582 = sadd.s32 %s580, %s581
      %s583 = smul.addr %s582, 8
      %s584 = scalar_lea.vmem %s12, %s583
      %p585 = pneg %p400
      %p586 = pneg %p397
      %p587 = scmp.lt.s32.totalorder %s29, 1
      %s588 = scalar_select %p587, %s29, 1
      %p589 = scmp.lt.s32.totalorder %s30, 1
      %s590 = scalar_select %p589, %s30, 1
      %s591 = smul.addr %s590, 2
      %s592 = smul.addr %s588, 4
      %s593 = sadd.s32 %s591, %s592
      %s594 = smul.addr %s593, 8
      %s595 = scalar_lea.vmem %s13, %s594
      %p596 = scmp.lt.s32.totalorder %s30, 1
      %s597 = scalar_select %p596, %s30, 1
      %s598 = smul.addr %s597, 2
      %s599 = smul.addr %s598, 8
      %s600 = scalar_lea.vmem %s0, %s599
      %p601 = scmp.lt.s32.totalorder %s29, 1
      %s602 = scalar_select %p601, %s29, 1
      %s603 = scalar_lea.vmem %s1, %s602
      %p604 = scmp.lt.s32.totalorder %s29, 1
      %s605 = scalar_select %p604, %s29, 1
      %s606 = scalar_lea.vmem %s2, %s605
      %p607 = scmp.lt.s32.totalorder %s29, 1
      %s608 = scalar_select %p607, %s29, 1
      %s609 = smul.addr %s608, 4
      %s610 = smul.addr %s609, 8
      %s611 = scalar_lea.vmem %s3, %s610
      %p612 = scmp.lt.s32.totalorder %s29, 1
      %s613 = scalar_select %p612, %s29, 1
      %s614 = scalar_lea.vmem %s4, %s613
      %p615 = scmp.lt.s32.totalorder %s29, 1
      %s616 = scalar_select %p615, %s29, 1
      %s617 = scalar_lea.vmem %s5, %s616
      %p618 = scmp.lt.s32.totalorder %s29, 1
      %s619 = scalar_select %p618, %s29, 1
      %s620 = scalar_lea.vmem %s6, %s619
      %p621 = scmp.lt.s32.totalorder %s30, 1
      %s622 = scalar_select %p621, %s30, 1
      %s623 = smul.addr %s622, 4
      %s624 = smul.addr %s623, 8
      %s625 = scalar_lea.vmem %s7, %s624
      %p626 = scmp.lt.s32.totalorder %s29, 1
      %s627 = scalar_select %p626, %s29, 1
      %s628 = smul.addr %s627, 2
      %s629 = scalar_lea.vmem %s8, %s628
      %p630 = scmp.lt.s32.totalorder %s29, 1
      %s631 = scalar_select %p630, %s29, 1
      %s632 = scalar_lea.vmem %s9, %s631
      %p633 = scmp.lt.s32.totalorder %s29, 1
      %s634 = scalar_select %p633, %s29, 1
      %s635 = smul.addr %s634, 2
      %s636 = scalar_lea.vmem %s10, %s635
      %p637 = scmp.lt.s32.totalorder %s29, 1
      %s638 = scalar_select %p637, %s29, 1
      %s639 = scalar_lea.vmem %s11, %s638
      %p640 = scmp.lt.s32.totalorder %s29, 1
      %s641 = scalar_select %p640, %s29, 1
      %p642 = scmp.lt.s32.totalorder %s30, 1
      %s643 = scalar_select %p642, %s30, 1
      %s644 = smul.addr %s643, 2
      %s645 = smul.addr %s641, 4
      %s646 = sadd.s32 %s644, %s645
      %s647 = smul.addr %s646, 8
      %s648 = scalar_lea.vmem %s12, %s647
      %p649 = scmp.lt.s32.totalorder %s29, 1
      %s650 = scalar_select %p649, %s29, 1
      %p651 = scmp.lt.s32.totalorder %s30, 1
      %s652 = scalar_select %p651, %s30, 1
      %s653 = smul.addr %s652, 2
      %s654 = smul.addr %s650, 4
      %s655 = sadd.s32 %s653, %s654
      %s656 = smul.addr %s655, 8
      %s657 = scalar_lea.vmem %s13, %s656
      %v658 = vld [vmem:[%s600] sm:$0xff]
      %v659 = vld [vmem:[%s600 + $0x8] sm:$0xff]
      %v660 = vld [vmem:[%s603] sm:$0x1]
      %662 = vset.pattern.permute.xlu0 0
      %663 = vperm.xlu0 %662, %v658
      %v664 = vpop.permute.xlu0 %663
      %667 = vset.pattern.permute.xlu0 0
      %668 = vperm.xlu0 %667, %v659
      %v669 = vpop.permute.xlu0 %668
      %v672 = vperm.slane %v660, 0
      %v674 = vmul.f32 %v664, %v672
      %v675 = vmul.f32 %v669, %v672
      %v676 = vld [vmem:[%s606] sm:$0x1]
      %v678 = vperm.slane %v676, 0
      %v680 = vadd.f32 %v674, %v678
      %v681 = vadd.f32 %v675, %v678
      %v682 = vmax.f32 %v680, 0.0
      %v683 = vmax.f32 %v681, 0.0
      %v684 = vld [vmem:[%s611] sm:$0xff]
      %v685 = vld [vmem:[%s611 + $0x8] sm:$0xff]
      %v686 = vld [vmem:[%s611 + $0x10] sm:$0xff]
      %v687 = vld [vmem:[%s611 + $0x18] sm:$0xff]
      %v688 = vld [vmem:[%s614] sm:$0x1]
      %v690 = vperm.slane %v688, 0
      %vm692 = vcmask 261120
      %v694 = vsel %vm692, %v682, 0
      %v697 = vsel %vm692, %v683, 0
      %699 = vmatpush.msra.mxu0 0.0
      %700 = vmatpush.msra.mxu0 0.0
      %701 = vmatpush.msra.mxu0 0.0
      %702 = vmatpush.msra.mxu0 0.0
      %703 = vmatpush.msra.mxu0 0.0
      %704 = vmatpush.msra.mxu0 0.0
      %705 = vmatpush.msra.mxu0 0.0
      %706 = vmatpush.msra.mxu0 0.0
      %707 = vmatpush.msra.mxu0 0.0
      %708 = vmatpush.msra.mxu0 0.0
      %709 = vmatpush.msra.mxu0 0.0
      %710 = vmatpush.msra.mxu0 0.0
      %711 = vmatpush.msra.mxu0 %v687
      %712 = vmatpush.msra.mxu0 %v686
      %713 = vmatpush.msra.mxu0 %v685
      %714 = vmatpush.msra.mxu0 %v684
      %715 = vmatmul.f32.gmra.mxu0 %v694
      %v716 = vpop.f32.mrf.mxu0
      %v717 = vadd.f32 %v690, %v716
      %718 = vmatmul.f32.gmra.mxu0 %v697
      %v719 = vpop.f32.mrf.mxu0
      %v720 = vadd.f32 %v690, %v719
      %721 = vdwg.mxu0
      %v722 = vmax.f32 %v717, 0.0
      %v723 = vmax.f32 %v720, 0.0
      %v724 = vld [vmem:[%s617] sm:$0x1]
      %v726 = vperm.slane %v724, 0
      %v728 = vmul.f32 %v722, %v726
      %v729 = vmul.f32 %v723, %v726
      %v730 = vsel %vm692, %v728, 0.0
      %731 = vadd.xlane.f32.xlu0 %v730
      %v732 = vpop.xlane.xlu0 %731
      %v733 = vsel %vm692, %v729, 0.0
      %734 = vadd.xlane.f32.xlu0 %v733
      %v735 = vpop.xlane.xlu0 %734
      %v736 = vld [vmem:[%s620] sm:$0x1]
      %v738 = vperm.slane %v736, 0
      %v740 = vadd.f32 %v732, %v738
      %v741 = vadd.f32 %v735, %v738
      %v742 = vmax.f32 %v740, 0.0
      %v743 = vmax.f32 %v741, 0.0
      %v744 = vld [vmem:[%s625] sm:$0xff]
      %v745 = vld [vmem:[%s625 + $0x8] sm:$0xff]
      %v746 = vld [vmem:[%s625 + $0x10] sm:$0xff]
      %v747 = vld [vmem:[%s625 + $0x18] sm:$0xff]
      %vm748 = vcmask 130048
      %v750 = vsel %vm748, %v744, 0
      %v753 = vsel %vm748, %v745, 0
      %v756 = vsel %vm748, %v746, 0
      %v759 = vsel %vm748, %v747, 0
      %761 = vmatpush.msra.mxu0 0.0
      %762 = vmatpush.msra.mxu0 0.0
      %763 = vmatpush.msra.mxu0 0.0
      %764 = vmatpush.msra.mxu0 0.0
      %765 = vmatpush.msra.mxu0 0.0
      %766 = vmatpush.msra.mxu0 0.0
      %767 = vmatpush.msra.mxu0 0.0
      %768 = vmatpush.msra.mxu0 0.0
      %769 = vmatpush.msra.mxu0 0.0
      %770 = vmatpush.msra.mxu0 0.0
      %771 = vmatpush.msra.mxu0 0.0
      %772 = vmatpush.msra.mxu0 0.0
      %773 = vmatpush.msra.mxu0 0.0
      %774 = vmatpush.msra.mxu0 0.0
      %775 = vmatpush.msra.mxu0 %v743
      %776 = vmatpush.msra.mxu0 %v742
      %777 = vmatmul.f32.gmra.mxu0 %v750
      %v778 = vpop.f32.mrf.mxu0
      %v779 = vadd.f32 0.0, %v778
      %780 = vmatmul.f32.gmra.mxu0 %v753
      %v781 = vpop.f32.mrf.mxu0
      %v782 = vadd.f32 0.0, %v781
      %783 = vmatmul.f32.gmra.mxu0 %v756
      %v784 = vpop.f32.mrf.mxu0
      %v785 = vadd.f32 0.0, %v784
      %786 = vmatmul.f32.gmra.mxu0 %v759
      %v787 = vpop.f32.mrf.mxu0
      %v788 = vadd.f32 0.0, %v787
      %789 = vdwg.mxu0
      %v790 = vld [vmem:[%s629] sm:$0x3]
      %v791 = vld [vmem:[%s632] sm:$0x1]
      %793 = vset.pattern.permute.xlu0 0
      %794 = vperm.xlu0 %793, %v779
      %v795 = vpop.permute.xlu0 %794
      %v797 = vperm.slane %v790, 0
      %v798 = vmul.f32 %v795, %v797
      %800 = vset.pattern.permute.xlu0 0
      %801 = vperm.xlu0 %800, %v782
      %v802 = vpop.permute.xlu0 %801
      %v804 = vperm.slane %v790, 1
      %v805 = vmul.f32 %v802, %v804
      %v806 = vadd.f32 %v798, %v805
      %v808 = vperm.slane %v791, 0
      %v810 = vadd.f32 %v806, %v808
      %v812 = vrot.slane %v810, 1
      %v814 = vmin.f32 %v810, %v812
      %v815 = vmax.f32 %v810, %v812
      %v817 = vrot.slane %v814, 2
      %v819 = vmin.f32 %v815, %v817
      %v820 = vmax.f32 %v815, %v817
      %v821 = vmin.f32 %v814, %v819
      %v822 = vmax.f32 %v814, %v819
      %v824 = vrot.slane %v819, 2
      %v826 = vmin.f32 %v820, %v824
      %v827 = vmax.f32 %v820, %v824
      %v829 = vrot.slane %v815, 2
      %v831 = vmin.f32 %v820, %v829
      %v832 = vmax.f32 %v820, %v829
      %v833 = vmin.f32 %v822, %v826
      %v834 = vmax.f32 %v822, %v826
      %v836 = vrot.slane %v826, 2
      %v838 = vmin.f32 %v827, %v836
      %v839 = vmax.f32 %v827, %v836
      %v841 = vrot.slane %v831, 2
      %v843 = vmin.f32 %v827, %v841
      %v844 = vmax.f32 %v827, %v841
      %v845 = vmin.f32 %v821, %v833
      %v846 = vmax.f32 %v821, %v833
      %v847 = vmin.f32 %v834, %v838
      %v848 = vmax.f32 %v834, %v838
      %v850 = vrot.slane %v843, 2
      %v852 = vmin.f32 %v839, %v850
      %v853 = vmax.f32 %v839, %v850
      %v855 = vrot.slane %v832, 2
      %v857 = vmin.f32 %v844, %v855
      %v858 = vmax.f32 %v844, %v855
      %v859 = vmin.f32 %v846, %v847
      %v860 = vmax.f32 %v846, %v847
      %v861 = vmin.f32 %v848, %v852
      %v862 = vmax.f32 %v848, %v852
      %v864 = vrot.slane %v857, 2
      %v866 = vmin.f32 %v853, %v864
      %v867 = vmax.f32 %v853, %v864
      %v868 = vmin.f32 %v845, %v859
      %v869 = vmax.f32 %v845, %v859
      %v870 = vmin.f32 %v860, %v861
      %v871 = vmax.f32 %v860, %v861
      %v872 = vmin.f32 %v862, %v866
      %v873 = vmax.f32 %v862, %v866
      %v875 = vrot.slane %v858, 2
      %v877 = vmin.f32 %v867, %v875
      %v878 = vmax.f32 %v867, %v875
      %v879 = vmin.f32 %v869, %v870
      %v880 = vmax.f32 %v869, %v870
      %v881 = vmin.f32 %v871, %v872
      %v882 = vmax.f32 %v871, %v872
      %v883 = vmin.f32 %v873, %v877
      %v884 = vmax.f32 %v873, %v877
      %v886 = vrot.slane %v879, 7
      %v889 = vrot.slane %v880, 6
      %v892 = vrot.slane %v881, 5
      %v895 = vrot.slane %v882, 4
      %v898 = vrot.slane %v883, 3
      %v901 = vrot.slane %v884, 2
      %v904 = vrot.slane %v878, 1
      %vm906 = vcmask 1040384
      %v907 = vsel %vm906, %v868, %v886
      %vm908 = vcmask 1041408
      %v909 = vsel %vm908, %v907, %v889
      %vm910 = vcmask 1042432
      %v911 = vsel %vm910, %v909, %v892
      %vm912 = vcmask 1043456
      %v913 = vsel %vm912, %v911, %v895
      %vm914 = vcmask 1044480
      %v915 = vsel %vm914, %v913, %v898
      %vm916 = vcmask 1045504
      %v917 = vsel %vm916, %v915, %v901
      %vm918 = vcmask 1046528
      %v919 = vsel %vm918, %v917, %v904
      %v921 = vrot.slane %v919, 7
      %v923 = vsub.f32 %v919, %v921
      %v924 = vperm.slane %v919, 0
      %v925 = vsub.f32 %v919, %v924
      %v927 = vrot.slane %v923, 1
      %vm929 = vcmask 63488
      %v930 = vsel %vm929, %v927, 0.0
      %v931 = vrot.slane %v930, 4
      %v932 = vadd.f32 %v930, %v931
      %v933 = vrot.slane %v932, 2
      %v934 = vadd.f32 %v932, %v933
      %v935 = vrot.slane %v934, 1
      %v936 = vadd.f32 %v934, %v935
      %v937 = vmul.f32 %v923, 0.5
      %v939 = vrot.slane %v937, 1
      %v941 = vadd.f32 %v925, %v939
      %942 = vxpose.xlu0.b32.start [1/16] %v941, 128
      %943 = vxpose.xlu0.b32.cont [2/16] 0.0, 128
      %944 = vxpose.xlu0.b32.cont [3/16] 0.0, 128
      %945 = vxpose.xlu0.b32.cont [4/16] 0.0, 128
      %946 = vxpose.xlu0.b32.cont [5/16] 0.0, 128
      %947 = vxpose.xlu0.b32.cont [6/16] 0.0, 128
      %948 = vxpose.xlu0.b32.cont [7/16] 0.0, 128
      %949 = vxpose.xlu0.b32.cont [8/16] 0.0, 128
      %950 = vxpose.xlu0.b32.cont [9/16] 0.0, 128
      %951 = vxpose.xlu0.b32.cont [10/16] 0.0, 128
      %952 = vxpose.xlu0.b32.cont [11/16] 0.0, 128
      %953 = vxpose.xlu0.b32.cont [12/16] 0.0, 128
      %954 = vxpose.xlu0.b32.cont [13/16] 0.0, 128
      %955 = vxpose.xlu0.b32.cont [14/16] 0.0, 128
      %956 = vxpose.xlu0.b32.cont [15/16] 0.0, 128
      %957 = vxpose.xlu0.b32.end [16/16] 0.0, 128
      %v958 = vpop.trf.xlu0
      %v959 = vpop.trf.xlu0
      %v960 = vpop.trf.xlu0
      %v961 = vpop.trf.xlu0
      %v962 = vpop.trf.xlu0
      %v963 = vpop.trf.xlu0
      %v964 = vpop.trf.xlu0
      %v965 = vpop.trf.xlu0
      %v966 = vpop.trf.xlu0
      %v967 = vpop.trf.xlu0
      %v968 = vpop.trf.xlu0
      %v969 = vpop.trf.xlu0
      %v970 = vpop.trf.xlu0
      %v971 = vpop.trf.xlu0
      %v972 = vpop.trf.xlu0
      %v973 = vpop.trf.xlu0
      %vm974 = vcmask 56320
      %v976 = vsel %vm974, %v958, 0
      %v978 = vsel %vm918, %v927, 0
      %980 = vmatpush.msra.mxu0 0.0
      %981 = vmatpush.msra.mxu0 0.0
      %982 = vmatpush.msra.mxu0 0.0
      %983 = vmatpush.msra.mxu0 0.0
      %984 = vmatpush.msra.mxu0 0.0
      %985 = vmatpush.msra.mxu0 0.0
      %986 = vmatpush.msra.mxu0 0.0
      %987 = vmatpush.msra.mxu0 0.0
      %988 = vmatpush.msra.mxu0 0.0
      %989 = vmatpush.msra.mxu0 0.0
      %990 = vmatpush.msra.mxu0 0.0
      %991 = vmatpush.msra.mxu0 0.0
      %992 = vmatpush.msra.mxu0 0.0
      %993 = vmatpush.msra.mxu0 0.0
      %994 = vmatpush.msra.mxu0 0.0
      %995 = vmatpush.msra.mxu0 %v978
      %996 = vmatmul.f32.gmra.mxu0 %v976
      %v997 = vpop.f32.mrf.mxu0
      %v998 = vadd.f32 0.0, %v997
      %999 = vdwg.mxu0
      %v1001 = vrot.slane %v998, 7
      %v1003 = vsel %vm906, %v936, %v1001
      %vm1004 = vcmask 64512
      %1005 = vst.msk [vmem:[%s648] sm:$0xff] %vm1004, %v1003
      %vm1006 = vcmask 57344
      %1007 = vst.msk [vmem:[%s648 + $0x8] sm:$0x1] %vm1006, %v1001
      %v1008 = vld [vmem:[%s636] sm:$0x3]
      %v1009 = vld [vmem:[%s639] sm:$0x1]
      %1011 = vset.pattern.permute.xlu0 0
      %1012 = vperm.xlu0 %1011, %v785
      %v1013 = vpop.permute.xlu0 %1012
      %v1015 = vperm.slane %v1008, 0
      %v1016 = vmul.f32 %v1013, %v1015
      %1018 = vset.pattern.permute.xlu0 0
      %1019 = vperm.xlu0 %1018, %v788
      %v1020 = vpop.permute.xlu0 %1019
      %v1022 = vperm.slane %v1008, 1
      %v1023 = vmul.f32 %v1020, %v1022
      %v1024 = vadd.f32 %v1016, %v1023
      %v1026 = vperm.slane %v1009, 0
      %v1028 = vadd.f32 %v1024, %v1026
      %v1030 = vrot.slane %v1028, 1
      %v1032 = vmin.f32 %v1028, %v1030
      %v1033 = vmax.f32 %v1028, %v1030
      %v1035 = vrot.slane %v1032, 2
      %v1037 = vmin.f32 %v1033, %v1035
      %v1038 = vmax.f32 %v1033, %v1035
      %v1039 = vmin.f32 %v1032, %v1037
      %v1040 = vmax.f32 %v1032, %v1037
      %v1042 = vrot.slane %v1037, 2
      %v1044 = vmin.f32 %v1038, %v1042
      %v1045 = vmax.f32 %v1038, %v1042
      %v1047 = vrot.slane %v1033, 2
      %v1049 = vmin.f32 %v1038, %v1047
      %v1050 = vmax.f32 %v1038, %v1047
      %v1051 = vmin.f32 %v1040, %v1044
      %v1052 = vmax.f32 %v1040, %v1044
      %v1054 = vrot.slane %v1044, 2
      %v1056 = vmin.f32 %v1045, %v1054
      %v1057 = vmax.f32 %v1045, %v1054
      %v1059 = vrot.slane %v1049, 2
      %v1061 = vmin.f32 %v1045, %v1059
      %v1062 = vmax.f32 %v1045, %v1059
      %v1063 = vmin.f32 %v1039, %v1051
      %v1064 = vmax.f32 %v1039, %v1051
      %v1065 = vmin.f32 %v1052, %v1056
      %v1066 = vmax.f32 %v1052, %v1056
      %v1068 = vrot.slane %v1061, 2
      %v1070 = vmin.f32 %v1057, %v1068
      %v1071 = vmax.f32 %v1057, %v1068
      %v1073 = vrot.slane %v1050, 2
      %v1075 = vmin.f32 %v1062, %v1073
      %v1076 = vmax.f32 %v1062, %v1073
      %v1077 = vmin.f32 %v1064, %v1065
      %v1078 = vmax.f32 %v1064, %v1065
      %v1079 = vmin.f32 %v1066, %v1070
      %v1080 = vmax.f32 %v1066, %v1070
      %v1082 = vrot.slane %v1075, 2
      %v1084 = vmin.f32 %v1071, %v1082
      %v1085 = vmax.f32 %v1071, %v1082
      %v1086 = vmin.f32 %v1063, %v1077
      %v1087 = vmax.f32 %v1063, %v1077
      %v1088 = vmin.f32 %v1078, %v1079
      %v1089 = vmax.f32 %v1078, %v1079
      %v1090 = vmin.f32 %v1080, %v1084
      %v1091 = vmax.f32 %v1080, %v1084
      %v1093 = vrot.slane %v1076, 2
      %v1095 = vmin.f32 %v1085, %v1093
      %v1096 = vmax.f32 %v1085, %v1093
      %v1097 = vmin.f32 %v1087, %v1088
      %v1098 = vmax.f32 %v1087, %v1088
      %v1099 = vmin.f32 %v1089, %v1090
      %v1100 = vmax.f32 %v1089, %v1090
      %v1101 = vmin.f32 %v1091, %v1095
      %v1102 = vmax.f32 %v1091, %v1095
      %v1104 = vrot.slane %v1097, 7
      %v1107 = vrot.slane %v1098, 6
      %v1110 = vrot.slane %v1099, 5
      %v1113 = vrot.slane %v1100, 4
      %v1116 = vrot.slane %v1101, 3
      %v1119 = vrot.slane %v1102, 2
      %v1122 = vrot.slane %v1096, 1
      %v1124 = vsel %vm906, %v1086, %v1104
      %v1125 = vsel %vm908, %v1124, %v1107
      %v1126 = vsel %vm910, %v1125, %v1110
      %v1127 = vsel %vm912, %v1126, %v1113
      %v1128 = vsel %vm914, %v1127, %v1116
      %v1129 = vsel %vm916, %v1128, %v1119
      %v1130 = vsel %vm918, %v1129, %v1122
      %v1132 = vrot.slane %v1130, 7
      %v1134 = vsub.f32 %v1130, %v1132
      %v1135 = vperm.slane %v1130, 0
      %v1136 = vsub.f32 %v1130, %v1135
      %v1138 = vrot.slane %v1134, 1
      %v1140 = vsel %vm929, %v1138, 0.0
      %v1141 = vrot.slane %v1140, 4
      %v1142 = vadd.f32 %v1140, %v1141
      %v1143 = vrot.slane %v1142, 2
      %v1144 = vadd.f32 %v1142, %v1143
      %v1145 = vrot.slane %v1144, 1
      %v1146 = vadd.f32 %v1144, %v1145
      %v1147 = vmul.f32 %v1134, 0.5
      %v1149 = vrot.slane %v1147, 1
      %v1151 = vadd.f32 %v1136, %v1149
      %1152 = vxpose.xlu0.b32.start [1/16] %v1151, 128
      %1153 = vxpose.xlu0.b32.cont [2/16] 0.0, 128
      %1154 = vxpose.xlu0.b32.cont [3/16] 0.0, 128
      %1155 = vxpose.xlu0.b32.cont [4/16] 0.0, 128
      %1156 = vxpose.xlu0.b32.cont [5/16] 0.0, 128
      %1157 = vxpose.xlu0.b32.cont [6/16] 0.0, 128
      %1158 = vxpose.xlu0.b32.cont [7/16] 0.0, 128
      %1159 = vxpose.xlu0.b32.cont [8/16] 0.0, 128
      %1160 = vxpose.xlu0.b32.cont [9/16] 0.0, 128
      %1161 = vxpose.xlu0.b32.cont [10/16] 0.0, 128
      %1162 = vxpose.xlu0.b32.cont [11/16] 0.0, 128
      %1163 = vxpose.xlu0.b32.cont [12/16] 0.0, 128
      %1164 = vxpose.xlu0.b32.cont [13/16] 0.0, 128
      %1165 = vxpose.xlu0.b32.cont [14/16] 0.0, 128
      %1166 = vxpose.xlu0.b32.cont [15/16] 0.0, 128
      %1167 = vxpose.xlu0.b32.end [16/16] 0.0, 128
      %v1168 = vpop.trf.xlu0
      %v1169 = vpop.trf.xlu0
      %v1170 = vpop.trf.xlu0
      %v1171 = vpop.trf.xlu0
      %v1172 = vpop.trf.xlu0
      %v1173 = vpop.trf.xlu0
      %v1174 = vpop.trf.xlu0
      %v1175 = vpop.trf.xlu0
      %v1176 = vpop.trf.xlu0
      %v1177 = vpop.trf.xlu0
      %v1178 = vpop.trf.xlu0
      %v1179 = vpop.trf.xlu0
      %v1180 = vpop.trf.xlu0
      %v1181 = vpop.trf.xlu0
      %v1182 = vpop.trf.xlu0
      %v1183 = vpop.trf.xlu0
      %v1185 = vsel %vm974, %v1168, 0
      %v1187 = vsel %vm918, %v1138, 0
      %1189 = vmatpush.msra.mxu0 0.0
      %1190 = vmatpush.msra.mxu0 0.0
      %1191 = vmatpush.msra.mxu0 0.0
      %1192 = vmatpush.msra.mxu0 0.0
      %1193 = vmatpush.msra.mxu0 0.0
      %1194 = vmatpush.msra.mxu0 0.0
      %1195 = vmatpush.msra.mxu0 0.0
      %1196 = vmatpush.msra.mxu0 0.0
      %1197 = vmatpush.msra.mxu0 0.0
      %1198 = vmatpush.msra.mxu0 0.0
      %1199 = vmatpush.msra.mxu0 0.0
      %1200 = vmatpush.msra.mxu0 0.0
      %1201 = vmatpush.msra.mxu0 0.0
      %1202 = vmatpush.msra.mxu0 0.0
      %1203 = vmatpush.msra.mxu0 0.0
      %1204 = vmatpush.msra.mxu0 %v1187
      %1205 = vmatmul.f32.gmra.mxu0 %v1185
      %v1206 = vpop.f32.mrf.mxu0
      %v1207 = vadd.f32 0.0, %v1206
      %1208 = vdwg.mxu0
      %v1210 = vrot.slane %v1207, 7
      %v1212 = vsel %vm906, %v1146, %v1210
      %1213 = vst.msk [vmem:[%s657] sm:$0xff] %vm1004, %v1212
      %1214 = vst.msk [vmem:[%s657 + $0x8] sm:$0x1] %vm1006, %v1210
      %p1215 = scmp.lt.s32.totalorder %s29, 1
      %s1216 = scalar_select %p1215, %s29, 1
      %p1217 = scmp.lt.s32.totalorder %s30, 1
      %s1218 = scalar_select %p1217, %s30, 1
      %s1219 = smul.addr %s1218, 2
      %s1220 = smul.addr %s1216, 4
      %s1221 = sadd.s32 %s1219, %s1220
      %s1222 = smul.addr %s1221, 8
      %s1223 = scalar_lea.vmem %s12, %s1222
      %p1224 = scmp.lt.s32.totalorder %s29, 1
      %s1225 = scalar_select %p1224, %s29, 1
      %p1226 = scmp.lt.s32.totalorder %s30, 1
      %s1227 = scalar_select %p1226, %s30, 1
      %s1228 = smul.addr %s1227, 2
      %s1229 = smul.addr %s1225, 4
      %s1230 = sadd.s32 %s1228, %s1229
      %s1231 = smul.addr %s1230, 8
      %s1232 = scalar_lea.vmem %s13, %s1231
      // Predicated region
      $region69: #{dgmslice_forward.2} parent=67 // pred_check
        %p1233 = pneg %p369
      $region70: #{dgmslice_forward.2} parent=67 // pred_check_branch
        %1235 = sbr.rel (%p1233) target = $region72
      $region71: #{dgmslice_forward.2} parent=67 // pred_region
        _
      $region72: #{dgmslice_forward.2} parent=67 // pred_fallthru
        _
      // Predicated region
      $region73: #{dgmslice_forward.2} parent=67 // pred_check
        %p1236 = pneg %p397
      $region74: #{dgmslice_forward.2} parent=67 // pred_check_branch
        %1238 = sbr.rel (%p1236) target = $region76
      $region75: #{dgmslice_forward.2} parent=67 // pred_region
        _
      $region76: #{dgmslice_forward.2} parent=67 // pred_fallthru
        _
    $region68: #{dgmslice_forward.2} parent=5 // pred_fallthru
      _
    %p1239 = scmp.le.s32.totalorder 2, %s20
    // Predicated region
    $region77: #{dgmslice_forward.2} parent=5 // pred_check
      %p1240 = pneg %p1239
    $region78: #{dgmslice_forward.2} parent=5 // pred_check_branch
      %1242 = sbr.rel (%p1240) target = $region80
    $region79: #{dgmslice_forward.2} parent=5 // pred_region
      %s1243 = ssub.s32 %s20, 2
      // Predicated region
      $region81: #{dgmslice_forward.2} parent=79 // pred_check
        %p1244 = pneg %p375
      $region82: #{dgmslice_forward.2} parent=79 // pred_check_branch
        %1246 = sbr.rel (%p1244) target = $region84
      $region83: #{dgmslice_forward.2} parent=79 // pred_region
        %p1247 = scmp.lt.s32.totalorder %s31, 1
        %s1248 = scalar_select %p1247, %s31, 1
        %p1249 = scmp.lt.s32.totalorder %s32, 1
        %s1250 = scalar_select %p1249, %s32, 1
        %s1251 = smul.addr %s1250, 2
        %s1252 = smul.addr %s1248, 4
        %s1253 = sadd.s32 %s1251, %s1252
        %s1254 = smul.addr %s1253, 8
        %s1255 = scalar_lea.vmem %s12, %s1254
      $region84: #{dgmslice_forward.2} parent=79 // pred_fallthru
        _
      // Predicated region
      $region85: #{dgmslice_forward.2} parent=79 // pred_check
        %p1256 = pneg %p403
      $region86: #{dgmslice_forward.2} parent=79 // pred_check_branch
        %1258 = sbr.rel (%p1256) target = $region88
      $region87: #{dgmslice_forward.2} parent=79 // pred_region
        %p1259 = scmp.lt.s32.totalorder %s31, 1
        %s1260 = scalar_select %p1259, %s31, 1
        %p1261 = scmp.lt.s32.totalorder %s32, 1
        %s1262 = scalar_select %p1261, %s32, 1
        %s1263 = smul.addr %s1262, 2
        %s1264 = smul.addr %s1260, 4
        %s1265 = sadd.s32 %s1263, %s1264
        %s1266 = smul.addr %s1265, 8
        %s1267 = scalar_lea.vmem %s13, %s1266
      $region88: #{dgmslice_forward.2} parent=79 // pred_fallthru
        _
    $region80: #{dgmslice_forward.2} parent=5 // pred_fallthru
      _
  $region6: #{dgmslice_forward.2} parent=0 // loop_footer
    %s24 = sadd.s32 1, %s20
  $region7: #{dgmslice_forward.2} parent=0 // loop_footer_branch
    %19 = sbr.rel target = $region3
  $region8: #{dgmslice_forward.2} parent=0 // loop_exit
    _

</llo_original>
